<compile_context>
chip_gen: v7x
topology: tpu7x:2x2x1
jax: 0.10.0
libtpu: 0.0.40
codegen_flags: <defaults>
</compile_context>

<pallas_src>
import jax
import jax.numpy as jnp
from jax import lax
from jax.experimental import pallas as pl

H1 = 600          # logical hidden widths (PyTorch module)
H2 = 300
H1P = 640         # lane-aligned (5 * 128)
H2P = 384         # lane-aligned (3 * 128)
LANE = 128
BN_EPS = 1e-3
LEAKY_SLOPE = 0.01  # PyTorch nn.LeakyReLU default negative_slope


def _round_up(n, m):
    return (n + m - 1) // m * m


def _leaky_relu(x):
    return jnp.where(x > 0, x, LEAKY_SLOPE * x)


def actor_kernel(x_ref, w0_ref, b0_ref, w1_ref, b1_ref, w2_ref, b2_ref, o_ref):
    # MXU operands in bf16 (native on v5e/v6e/v7x), f32 accumulation.
    # Element-wise math stays f32 (v5e VPU/EUP have no bf16 path).
    x = x_ref[...].astype(jnp.bfloat16)                       # [B, n_states]

    # ---- input linear: [B, n_states] @ [n_states, 640] + [1, 640] ----
    h = jnp.dot(x, w0_ref[...], preferred_element_type=jnp.float32) + b0_ref[...]

    # ---- BatchNorm1d(600, eps=1e-3, affine=False), training-mode semantics.
    #      Padded columns are exactly zero -> mean 0, var 0 -> remain zero. ----
    mean = jnp.mean(h, axis=0, keepdims=True)                  # [1, 640]
    hc = h - mean                                              # reused for var & norm
    var = jnp.mean(hc * hc, axis=0, keepdims=True)
    h = hc * lax.rsqrt(var + BN_EPS)

    # ---- LeakyReLU ----
    h = _leaky_relu(h)

    # ---- fc1: [B, 640] @ [640, 384] + [1, 384] ----
    h = jnp.dot(h.astype(jnp.bfloat16), w1_ref[...],
                preferred_element_type=jnp.float32) + b1_ref[...]
    h = _leaky_relu(h)

    # ---- fc2: [B, 384] @ [384, A_pad] + [1, A_pad] ----
    h = jnp.dot(h.astype(jnp.bfloat16), w2_ref[...],
                preferred_element_type=jnp.float32) + b2_ref[...]

    # ---- tanh, lane-dense store (A_pad is a multiple of 128) ----
    o_ref[...] = jnp.tanh(h)


def actor_forward(state, params, n_actions):
    """state: [B, n_states] float32 -> [B, n_actions] float32."""
    w0, b0, w1, b1, w2, b2 = params
    B, _ = state.shape
    a_pad = w2.shape[1]

    full = lambda a: pl.BlockSpec(a.shape, lambda: (0,) * a.ndim)

    out_padded = pl.pallas_call(
        actor_kernel,
        out_shape=jax.ShapeDtypeStruct((B, a_pad), jnp.float32),
        grid=(),
        in_specs=[full(state), full(w0), full(b0), full(w1), full(b1),
                  full(w2), full(b2)],
        out_specs=pl.BlockSpec((B, a_pad), lambda: (0, 0)),
    )(state, w0, b0, w1, b1, w2, b2)

    return out_padded[:, :n_actions]


def init_params(key, n_states, n_actions, init_w=0.0005):
    """Deterministic init mirroring ActorNetwork.__init__ / init_weights.

    Weights are created in [in, out] layout (transposed vs. PyTorch's [out, in])
    so the kernel computes x @ W directly, zero-padded to lane-aligned widths,
    and stored as bf16 (halves weight DMA; MXU is bf16-native).  fanin_init uses
    weight.size()[0] == out_features as 'fanin' in the reference code; that
    quirk is reproduced (v = 1/sqrt(out)).  Biases keep nn.Linear's default
    uniform(-1/sqrt(in), 1/sqrt(in)) since init_weights never touches them
    (including fc2's bias), and stay f32.
    """
    ks = jax.random.split(key, 6)
    a_pad = _round_up(n_actions, LANE)

    def pad2(a, rows, cols):
        return jnp.pad(a, ((0, rows - a.shape[0]), (0, cols - a.shape[1])))

    def fanin_w(k, fan_in, fan_out):
        v = 1.0 / jnp.sqrt(jnp.float32(fan_out))   # size[0] == out_features quirk
        return jax.random.uniform(k, (fan_in, fan_out), jnp.float32, -v, v)

    def default_bias(k, fan_in, fan_out):
        v = 1.0 / jnp.sqrt(jnp.float32(fan_in))
        return jax.random.uniform(k, (1, fan_out), jnp.float32, -v, v)

    w0 = pad2(fanin_w(ks[0], n_states, H1), n_states, H1P)
    b0 = pad2(default_bias(ks[1], n_states, H1), 1, H1P)
    w1 = pad2(fanin_w(ks[2], H1, H2), H1P, H2P)
    b1 = pad2(default_bias(ks[3], H1, H2), 1, H2P)
    w2 = pad2(jax.random.uniform(ks[4], (H2, n_actions), jnp.float32,
                                 -init_w, init_w), H2P, a_pad)
    b2 = pad2(default_bias(ks[5], H2, n_actions), 1, a_pad)

    return (w0.astype(jnp.bfloat16), b0,
            w1.astype(jnp.bfloat16), b1,
            w2.astype(jnp.bfloat16), b2)


def reference_forward(state, params, n_actions):
    """Pure-JAX reference using the same bf16-matmul / f32-elementwise recipe."""
    w0, b0, w1, b1, w2, b2 = params
    h = jnp.dot(state.astype(jnp.bfloat16), w0,
                preferred_element_type=jnp.float32) + b0
    mean = jnp.mean(h, axis=0, keepdims=True)
    hc = h - mean
    var = jnp.mean(hc * hc, axis=0, keepdims=True)
    h = hc * lax.rsqrt(var + BN_EPS)
    h = jnp.where(h > 0, h, LEAKY_SLOPE * h)
    h = jnp.dot(h.astype(jnp.bfloat16), w1,
                preferred_element_type=jnp.float32) + b1
    h = jnp.where(h > 0, h, LEAKY_SLOPE * h)
    h = jnp.dot(h.astype(jnp.bfloat16), w2,
                preferred_element_type=jnp.float32) + b2
    return jnp.tanh(h)[:, :n_actions]


if __name__ == "__main__":
    key = jax.random.PRNGKey(0)
    k_x, k_p = jax.random.split(key)

    batch = 128       # multiple of 8 (sublane) so BN stats need no row masking
    n_states = 32
    n_actions = 8

    state = jax.random.normal(k_x, (batch, n_states), jnp.float32)
    params = init_params(k_p, n_states, n_actions)

    out = actor_forward(state, params, n_actions)
    out = jax.block_until_ready(out)

    ref = reference_forward(state, params, n_actions)
    assert out.shape == (batch, n_actions)
    assert jnp.allclose(out, ref, atol=5e-4, rtol=1e-3), \
        float(jnp.max(jnp.abs(out - ref)))

    print("KERNEL_OK")
</pallas_src>

<mosaic_0001>
module attributes {stable_mosaic.version = 11 : i64} {
  func.func @actor_kernel(%arg0: memref<128x32xf32, #tpu.memory_space<vmem>>, %arg1: memref<32x640xbf16, #tpu.memory_space<vmem>>, %arg2: memref<1x640xf32, #tpu.memory_space<vmem>>, %arg3: memref<640x384xbf16, #tpu.memory_space<vmem>>, %arg4: memref<1x384xf32, #tpu.memory_space<vmem>>, %arg5: memref<384x128xbf16, #tpu.memory_space<vmem>>, %arg6: memref<1x128xf32, #tpu.memory_space<vmem>>, %arg7: memref<128x128xf32, #tpu.memory_space<vmem>>) attributes {dimension_semantics = [], scalar_prefetch = 0 : i64, scratch_operands = 0 : i64, tpu.core_type = #tpu.core_type<tc>} {
    %c0 = arith.constant 0 : index
    %c0_0 = arith.constant 0 : index
    %0 = vector.load %arg0[%c0, %c0_0] : memref<128x32xf32, #tpu.memory_space<vmem>>, vector<128x32xf32>
    %1 = arith.truncf %0 : vector<128x32xf32> to vector<128x32xbf16>
    %c0_1 = arith.constant 0 : index
    %c0_2 = arith.constant 0 : index
    %2 = vector.load %arg1[%c0_1, %c0_2] : memref<32x640xbf16, #tpu.memory_space<vmem>>, vector<32x640xbf16>
    %cst = arith.constant dense<0.000000e+00> : vector<128x640xf32>
    %3 = tpu.matmul %1, %2, %cst {dimension_numbers = #tpu.dot_dimension_numbers<[1], [0], [0], [1], [0, 0, 1, 1], [], []>} : vector<128x32xbf16>, vector<32x640xbf16>, vector<128x640xf32> -> vector<128x640xf32>
    %c0_3 = arith.constant 0 : index
    %c0_4 = arith.constant 0 : index
    %4 = vector.load %arg2[%c0_3, %c0_4] : memref<1x640xf32, #tpu.memory_space<vmem>>, vector<1x640xf32>
    %5 = vector.broadcast %4 : vector<1x640xf32> to vector<128x640xf32>
    %6 = arith.addf %3, %5 : vector<128x640xf32>
    %cst_5 = arith.constant dense<0.000000e+00> : vector<640xf32>
    %7 = vector.multi_reduction <add>, %6, %cst_5 [0] : vector<128x640xf32> to vector<640xf32>
    %8 = vector.shape_cast %7 : vector<640xf32> to vector<1x640xf32>
    %cst_6 = arith.constant 1.280000e+02 : f32
    %9 = vector.broadcast %cst_6 : f32 to vector<1x640xf32>
    %10 = arith.divf %8, %9 : vector<1x640xf32>
    %11 = vector.broadcast %10 : vector<1x640xf32> to vector<128x640xf32>
    %12 = arith.subf %6, %11 : vector<128x640xf32>
    %13 = arith.mulf %12, %12 : vector<128x640xf32>
    %cst_7 = arith.constant dense<0.000000e+00> : vector<640xf32>
    %14 = vector.multi_reduction <add>, %13, %cst_7 [0] : vector<128x640xf32> to vector<640xf32>
    %15 = vector.shape_cast %14 : vector<640xf32> to vector<1x640xf32>
    %cst_8 = arith.constant 1.280000e+02 : f32
    %16 = vector.broadcast %cst_8 : f32 to vector<1x640xf32>
    %17 = arith.divf %15, %16 : vector<1x640xf32>
    %cst_9 = arith.constant 1.000000e-03 : f32
    %18 = vector.broadcast %cst_9 : f32 to vector<1x640xf32>
    %19 = arith.addf %17, %18 : vector<1x640xf32>
    %20 = math.rsqrt %19 : vector<1x640xf32>
    %21 = vector.broadcast %20 : vector<1x640xf32> to vector<128x640xf32>
    %22 = arith.mulf %12, %21 : vector<128x640xf32>
    %cst_10 = arith.constant 0.000000e+00 : f32
    %23 = vector.broadcast %cst_10 : f32 to vector<128x640xf32>
    %24 = arith.cmpf ogt, %22, %23 : vector<128x640xf32>
    %cst_11 = arith.constant 0.00999999977 : f32
    %25 = vector.broadcast %cst_11 : f32 to vector<128x640xf32>
    %26 = arith.mulf %25, %22 : vector<128x640xf32>
    %27 = arith.select %24, %22, %26 : vector<128x640xi1>, vector<128x640xf32>
    %28 = arith.truncf %27 : vector<128x640xf32> to vector<128x640xbf16>
    %c0_12 = arith.constant 0 : index
    %c0_13 = arith.constant 0 : index
    %29 = vector.load %arg3[%c0_12, %c0_13] : memref<640x384xbf16, #tpu.memory_space<vmem>>, vector<640x384xbf16>
    %cst_14 = arith.constant dense<0.000000e+00> : vector<128x384xf32>
    %30 = tpu.matmul %28, %29, %cst_14 {dimension_numbers = #tpu.dot_dimension_numbers<[1], [0], [0], [1], [0, 0, 1, 1], [], []>} : vector<128x640xbf16>, vector<640x384xbf16>, vector<128x384xf32> -> vector<128x384xf32>
    %c0_15 = arith.constant 0 : index
    %c0_16 = arith.constant 0 : index
    %31 = vector.load %arg4[%c0_15, %c0_16] : memref<1x384xf32, #tpu.memory_space<vmem>>, vector<1x384xf32>
    %32 = vector.broadcast %31 : vector<1x384xf32> to vector<128x384xf32>
    %33 = arith.addf %30, %32 : vector<128x384xf32>
    %cst_17 = arith.constant 0.000000e+00 : f32
    %34 = vector.broadcast %cst_17 : f32 to vector<128x384xf32>
    %35 = arith.cmpf ogt, %33, %34 : vector<128x384xf32>
    %cst_18 = arith.constant 0.00999999977 : f32
    %36 = vector.broadcast %cst_18 : f32 to vector<128x384xf32>
    %37 = arith.mulf %36, %33 : vector<128x384xf32>
    %38 = arith.select %35, %33, %37 : vector<128x384xi1>, vector<128x384xf32>
    %39 = arith.truncf %38 : vector<128x384xf32> to vector<128x384xbf16>
    %c0_19 = arith.constant 0 : index
    %c0_20 = arith.constant 0 : index
    %40 = vector.load %arg5[%c0_19, %c0_20] : memref<384x128xbf16, #tpu.memory_space<vmem>>, vector<384x128xbf16>
    %cst_21 = arith.constant dense<0.000000e+00> : vector<128x128xf32>
    %41 = tpu.matmul %39, %40, %cst_21 {dimension_numbers = #tpu.dot_dimension_numbers<[1], [0], [0], [1], [0, 0, 1, 1], [], []>} : vector<128x384xbf16>, vector<384x128xbf16>, vector<128x128xf32> -> vector<128x128xf32>
    %c0_22 = arith.constant 0 : index
    %c0_23 = arith.constant 0 : index
    %42 = vector.load %arg6[%c0_22, %c0_23] : memref<1x128xf32, #tpu.memory_space<vmem>>, vector<1x128xf32>
    %43 = vector.broadcast %42 : vector<1x128xf32> to vector<128x128xf32>
    %44 = arith.addf %41, %43 : vector<128x128xf32>
    %45 = math.tanh %44 : vector<128x128xf32>
    %c0_24 = arith.constant 0 : index
    %c0_25 = arith.constant 0 : index
    %46 = vector.load %arg7[%c0_24, %c0_25] : memref<128x128xf32, #tpu.memory_space<vmem>>, vector<128x128xf32>
    tpu.vector_store %arg7[%c0_24, %c0_25], %45 {strides = array<i32>} : memref<128x128xf32, #tpu.memory_space<vmem>>, vector<128x128xf32>,
    return
  }
}

</mosaic_0001>

<llo_original>
// kernel: tpu_custom_call.1
$region0: #{tpu_custom_call.1}
  #allocation0 [shape = 'u32[]', space=smem, size = 0x4, offset = 0x4, fixed_abs, tag = 'smem constant byte address 0x4 - core index']
  #allocation1 [shape = 'u32[144,128]{1,0:T(1,128)}', space=vmem, size = 0x12000, scoped, tag = 'internal scratch']
  %s0 = inlined_call_operand.vmem [shape: f32[128,32], index: 0, kind: input, shape index: {}]
  %s1 = inlined_call_operand.vmem [shape: bf16[32,640], index: 1, kind: input, shape index: {}]
  %s2 = inlined_call_operand.vmem [shape: f32[1,640], index: 2, kind: input, shape index: {}]
  %s3 = inlined_call_operand.hbm [shape: bf16[640,384], index: 3, kind: input, shape index: {}]
  %s4 = inlined_call_operand.vmem [shape: f32[1,384], index: 4, kind: input, shape index: {}]
  %s5 = inlined_call_operand.hbm [shape: bf16[384,128], index: 5, kind: input, shape index: {}]
  %s6 = inlined_call_operand.vmem [shape: f32[1,128], index: 6, kind: input, shape index: {}]
  %s7 = inlined_call_operand.hbm [shape: f32[128,128], index: 7, kind: output, shape index: {}]
  %s8 = sld [smem:[#allocation0]]
  $region46: #{tpu_custom_call.1} parent=0
    _
  %s10 = ssub.s32 1, %s8
  %s11 = scalar_select 0, %s10, %s8
  $region1: #{tpu_custom_call.1} parent=0
    #allocation2 [shape = 'u8[491520]{0}', space=vmem, size = 0x78000, scoped, tag = 'input window, operand 3, single buffered']
    #allocation3 [shape = 's32[1]{0}', space=sflag, size = 0x4, scoped, tag = 'scoped memory for tpu_custom_call.1']
    #allocation4 [shape = 's32[1]{0}', space=sflag, size = 0x4, scoped, tag = 'scoped memory for tpu_custom_call.1']
    #allocation5 [shape = 'u8[98304]{0}', space=vmem, size = 0x18000, scoped, tag = 'input window, operand 5, single buffered']
    #allocation6 [shape = 's32[1]{0}', space=sflag, size = 0x4, scoped, tag = 'scoped memory for tpu_custom_call.1']
    #allocation7 [shape = 'u8[65536]{0}', space=vmem, size = 0x10000, scoped, tag = 'output window, operand 0, single buffered']
    %12 = vsyncpa [#allocation3], 0
    %13 = vsyncpa [#allocation6], 0
    %14 = vsyncpa [#allocation4], 0
    // Predicated region
    $region2: #{tpu_custom_call.1} parent=1 // pred_check
      _
    $region3: #{tpu_custom_call.1} parent=1 // pred_check_branch
      %16 = sbr.rel (0) target = $region5
    $region4: #{tpu_custom_call.1} parent=1 // pred_region
      _
    $region5: #{tpu_custom_call.1} parent=1 // pred_fallthru
      _
    // Predicated region
    $region6: #{tpu_custom_call.1} parent=1 // pred_check
      _
    $region7: #{tpu_custom_call.1} parent=1 // pred_check_branch
      %18 = sbr.rel (0) target = $region9
    $region8: #{tpu_custom_call.1} parent=1 // pred_region
      _
    $region9: #{tpu_custom_call.1} parent=1 // pred_fallthru
      _
    // Predicated region
    $region10: #{tpu_custom_call.1} parent=1 // pred_check
      _
    $region11: #{tpu_custom_call.1} parent=1 // pred_check_branch
      %20 = sbr.rel (0) target = $region13
    $region12: #{tpu_custom_call.1} parent=1 // pred_region
      _
    $region13: #{tpu_custom_call.1} parent=1 // pred_fallthru
      _
    // Predicated region
    $region14: #{tpu_custom_call.1} parent=1 // pred_check
      _
    $region15: #{tpu_custom_call.1} parent=1 // pred_check_branch
      %22 = sbr.rel (0) target = $region17
    $region16: #{tpu_custom_call.1} parent=1 // pred_region
      %s24 = ssub.s32 15360, 15360
      %25 = vsyncadd [#allocation3], %s24
      %s26 = sshll.u32 [#allocation2], 4
      %s27 = int_to_ptr.vmem [resolvable:$true] %s26
      %32 = dma.hbm_to_vmem [thread:$0]  %s3, 15360, %s27, [#allocation3], 192, 192, 12
    $region17: #{tpu_custom_call.1} parent=1 // pred_fallthru
      _
    // Predicated region
    $region18: #{tpu_custom_call.1} parent=1 // pred_check
      _
    $region19: #{tpu_custom_call.1} parent=1 // pred_check_branch
      %34 = sbr.rel (0) target = $region21
    $region20: #{tpu_custom_call.1} parent=1 // pred_region
      _
    $region21: #{tpu_custom_call.1} parent=1 // pred_fallthru
      _
    // Predicated region
    $region22: #{tpu_custom_call.1} parent=1 // pred_check
      _
    $region23: #{tpu_custom_call.1} parent=1 // pred_check_branch
      %36 = sbr.rel (0) target = $region25
    $region24: #{tpu_custom_call.1} parent=1 // pred_region
      %s38 = ssub.s32 3072, 3072
      %39 = vsyncadd [#allocation6], %s38
      %s40 = sshll.u32 [#allocation5], 4
      %s41 = int_to_ptr.vmem [resolvable:$true] %s40
      %46 = dma.hbm_to_vmem [thread:$0]  %s5, 3072, %s41, [#allocation6], 64, 64, 4
    $region25: #{tpu_custom_call.1} parent=1 // pred_fallthru
      _
    // Predicated region
    $region26: #{tpu_custom_call.1} parent=1 // pred_check
      _
    $region27: #{tpu_custom_call.1} parent=1 // pred_check_branch
      %48 = sbr.rel (0) target = $region29
    $region28: #{tpu_custom_call.1} parent=1 // pred_region
      _
    $region29: #{tpu_custom_call.1} parent=1 // pred_fallthru
      _
    // Predicated region
    $region30: #{tpu_custom_call.1} parent=1 // pred_check
      _
    $region31: #{tpu_custom_call.1} parent=1 // pred_check_branch
      %50 = sbr.rel (0) target = $region33
    $region32: #{tpu_custom_call.1} parent=1 // pred_region
      %51 = dma.done [#allocation3], 15360
    $region33: #{tpu_custom_call.1} parent=1 // pred_fallthru
      _
    // Predicated region
    $region34: #{tpu_custom_call.1} parent=1 // pred_check
      _
    $region35: #{tpu_custom_call.1} parent=1 // pred_check_branch
      %53 = sbr.rel (0) target = $region37
    $region36: #{tpu_custom_call.1} parent=1 // pred_region
      %54 = dma.done [#allocation6], 3072
    $region37: #{tpu_custom_call.1} parent=1 // pred_fallthru
      _
    %v56 = vld [vmem:[%s0] sm:$0xff]
    %v57 = vld [vmem:[%s0 + $0x8] sm:$0xff]
    %v58 = vld [vmem:[%s0 + $0x10] sm:$0xff]
    %v59 = vld [vmem:[%s0 + $0x18] sm:$0xff]
    %v60 = vld [vmem:[%s0 + $0x20] sm:$0xff]
    %v61 = vld [vmem:[%s0 + $0x28] sm:$0xff]
    %v62 = vld [vmem:[%s0 + $0x30] sm:$0xff]
    %v63 = vld [vmem:[%s0 + $0x38] sm:$0xff]
    %v64 = vld [vmem:[%s0 + $0x40] sm:$0xff]
    %v65 = vld [vmem:[%s0 + $0x48] sm:$0xff]
    %v66 = vld [vmem:[%s0 + $0x50] sm:$0xff]
    %v67 = vld [vmem:[%s0 + $0x58] sm:$0xff]
    %v68 = vld [vmem:[%s0 + $0x60] sm:$0xff]
    %v69 = vld [vmem:[%s0 + $0x68] sm:$0xff]
    %v70 = vld [vmem:[%s0 + $0x70] sm:$0xff]
    %v71 = vld [vmem:[%s0 + $0x78] sm:$0xff]
    %v72 = vpack.c.bf16 %v57, %v56
    %v73 = vpack.c.bf16 %v59, %v58
    %v74 = vpack.c.bf16 %v61, %v60
    %v75 = vpack.c.bf16 %v63, %v62
    %v76 = vpack.c.bf16 %v65, %v64
    %v77 = vpack.c.bf16 %v67, %v66
    %v78 = vpack.c.bf16 %v69, %v68
    %v79 = vpack.c.bf16 %v71, %v70
    %v80 = vld [vmem:[%s1] sm:$0xff]
    %v81 = vld [vmem:[%s1 + $0x8] sm:$0xff]
    %v82 = vld [vmem:[%s1 + $0x10] sm:$0xf]
    %v83 = vld [vmem:[%s1 + $0x14] sm:$0xff]
    %v84 = vld [vmem:[%s1 + $0x1c] sm:$0xff]
    %v85 = vld [vmem:[%s1 + $0x24] sm:$0xf]
    %v86 = vld [vmem:[%s1 + $0x28] sm:$0xff]
    %v87 = vld [vmem:[%s1 + $0x30] sm:$0xff]
    %v88 = vld [vmem:[%s1 + $0x38] sm:$0xf]
    %v89 = vld [vmem:[%s1 + $0x3c] sm:$0xff]
    %v90 = vld [vmem:[%s1 + $0x44] sm:$0xff]
    %v91 = vld [vmem:[%s1 + $0x4c] sm:$0xf]
    %v92 = vld [vmem:[%s2] sm:$0x1f]
    %v94 = vlaneseq
    %v95 = vshrl.u32 %v94, 7
    %v96 = vsub.s32 0, %v95
    %v97 = vrot.slane %v92, %v96
    %v98 = vlaneseq
    %v99 = vshrl.u32 %v98, 7
    %v100 = vsub.s32 1, %v99
    %v101 = vrot.slane %v92, %v100
    %v102 = vlaneseq
    %v103 = vshrl.u32 %v102, 7
    %v104 = vsub.s32 2, %v103
    %v105 = vrot.slane %v92, %v104
    %v106 = vlaneseq
    %v107 = vshrl.u32 %v106, 7
    %v108 = vsub.s32 3, %v107
    %v109 = vrot.slane %v92, %v108
    %v110 = vlaneseq
    %v111 = vshrl.u32 %v110, 7
    %v112 = vsub.s32 4, %v111
    %v113 = vrot.slane %v92, %v112
    %v131 = vunpack.c.l.b16 %v80
    %v132 = vunpack.c.h.b16 %v80
    %v133 = vunpack.c.l.b16 %v81
    %v134 = vunpack.c.h.b16 %v81
    %v135 = vunpack.c.l.b16 %v82
    %v136 = vunpack.c.l.b16 %v83
    %v137 = vunpack.c.h.b16 %v83
    %v138 = vunpack.c.l.b16 %v84
    %v139 = vunpack.c.h.b16 %v84
    %v140 = vunpack.c.l.b16 %v85
    %v141 = vunpack.c.l.b16 %v86
    %v142 = vunpack.c.h.b16 %v86
    %v143 = vunpack.c.l.b16 %v87
    %v144 = vunpack.c.h.b16 %v87
    %v145 = vunpack.c.l.b16 %v88
    %v146 = vunpack.c.l.b16 %v89
    %v147 = vunpack.c.h.b16 %v89
    %v148 = vunpack.c.l.b16 %v90
    %v149 = vunpack.c.h.b16 %v90
    %v150 = vunpack.c.l.b16 %v91
    %v151 = vpack.c.b16 %v136, %v131
    %v152 = vpack.c.b16 %v137, %v132
    %v153 = vpack.c.b16 %v138, %v133
    %v154 = vpack.c.b16 %v139, %v134
    %v155 = vpack.c.b16 %v140, %v135
    %v156 = vpack.c.b16 %v146, %v141
    %v157 = vpack.c.b16 %v147, %v142
    %v158 = vpack.c.b16 %v148, %v143
    %v159 = vpack.c.b16 %v149, %v144
    %v160 = vpack.c.b16 %v150, %v145
    %vm171 = vcmask 261120
    %v173 = vsel %vm171, %v72, 0
    %v176 = vsel %vm171, %v73, 0
    %v179 = vsel %vm171, %v74, 0
    %v182 = vsel %vm171, %v75, 0
    %v185 = vsel %vm171, %v76, 0
    %v188 = vsel %vm171, %v77, 0
    %v191 = vsel %vm171, %v78, 0
    %v194 = vsel %vm171, %v79, 0
    %196 = vmatprep.subr.bf16.mxu0 %v152
    %197 = vmatpush1.bf16.msra.mxu0 %v151
    %198 = vmatprep.subr.bf16.mxu0 %v157
    %199 = vmatpush1.bf16.msra.mxu0 %v156
    %200 = vmatprep.subr.bf16.mxu0 0
    %201 = vmatpush1.bf16.msra.mxu0 0
    %202 = vmatprep.subr.bf16.mxu0 0
    %203 = vmatpush1.bf16.msra.mxu0 0
    %204 = vmatprep.subr.bf16.mxu0 0
    %205 = vmatpush1.bf16.msra.mxu0 0
    %206 = vmatprep.subr.bf16.mxu0 0
    %207 = vmatpush1.bf16.msra.mxu0 0
    %208 = vmatprep.subr.bf16.mxu0 0
    %209 = vmatpush1.bf16.msra.mxu0 0
    %210 = vmatprep.subr.bf16.mxu0 0
    %211 = vmatpush1.bf16.msra.mxu0 0
    %212 = vmatprep.subr.bf16.mxu0 0
    %213 = vmatpush1.bf16.msra.mxu0 0
    %214 = vmatprep.subr.bf16.mxu0 0
    %215 = vmatpush1.bf16.msra.mxu0 0
    %216 = vmatprep.subr.bf16.mxu0 0
    %217 = vmatpush1.bf16.msra.mxu0 0
    %218 = vmatprep.subr.bf16.mxu0 0
    %219 = vmatpush1.bf16.msra.mxu0 0
    %220 = vmatprep.subr.bf16.mxu0 0
    %221 = vmatpush1.bf16.msra.mxu0 0
    %222 = vmatprep.subr.bf16.mxu0 0
    %223 = vmatpush1.bf16.msra.mxu0 0
    %224 = vmatprep.subr.bf16.mxu0 0
    %225 = vmatpush1.bf16.msra.mxu0 0
    %226 = vmatprep.subr.bf16.mxu0 0
    %227 = vmatpush1.bf16.msra.mxu0 0
    %228 = vmatprep.mubr.bf16.mxu0 0
    %229 = vmatmul.mubr.bf16.gmra.mrb[0].mxu0 %v173
    %v230 = vpop.f32.mrb[0].mxu0
    %v231 = vadd.f32 %v97, %v230
    %v232 = vpop.f32.mrb[0].mxu0
    %v233 = vadd.f32 %v101, %v232
    %v234 = vpop.f32.mrb[0].mxu0
    %v235 = vadd.f32 %v97, %v234
    %v236 = vpop.f32.mrb[0].mxu0
    %v237 = vadd.f32 %v101, %v236
    %238 = vmatprep.mubr.bf16.mxu0 0
    %239 = vmatmul.mubr.bf16.gmra.mrb[0].mxu0 %v176
    %v240 = vpop.f32.mrb[0].mxu0
    %v241 = vadd.f32 %v97, %v240
    %v242 = vpop.f32.mrb[0].mxu0
    %v243 = vadd.f32 %v101, %v242
    %v244 = vpop.f32.mrb[0].mxu0
    %v245 = vadd.f32 %v97, %v244
    %v246 = vpop.f32.mrb[0].mxu0
    %v247 = vadd.f32 %v101, %v246
    %248 = vmatprep.mubr.bf16.mxu0 0
    %249 = vmatmul.mubr.bf16.gmra.mrb[0].mxu0 %v179
    %v250 = vpop.f32.mrb[0].mxu0
    %v251 = vadd.f32 %v97, %v250
    %v252 = vpop.f32.mrb[0].mxu0
    %v253 = vadd.f32 %v101, %v252
    %v254 = vpop.f32.mrb[0].mxu0
    %v255 = vadd.f32 %v97, %v254
    %v256 = vpop.f32.mrb[0].mxu0
    %v257 = vadd.f32 %v101, %v256
    %258 = vmatprep.mubr.bf16.mxu0 0
    %259 = vmatmul.mubr.bf16.gmra.mrb[0].mxu0 %v182
    %v260 = vpop.f32.mrb[0].mxu0
    %v261 = vadd.f32 %v97, %v260
    %v262 = vpop.f32.mrb[0].mxu0
    %v263 = vadd.f32 %v101, %v262
    %v264 = vpop.f32.mrb[0].mxu0
    %v265 = vadd.f32 %v97, %v264
    %v266 = vpop.f32.mrb[0].mxu0
    %v267 = vadd.f32 %v101, %v266
    %268 = vmatprep.mubr.bf16.mxu0 0
    %269 = vmatmul.mubr.bf16.gmra.mrb[0].mxu0 %v185
    %v270 = vpop.f32.mrb[0].mxu0
    %v271 = vadd.f32 %v97, %v270
    %v272 = vpop.f32.mrb[0].mxu0
    %v273 = vadd.f32 %v101, %v272
    %v274 = vpop.f32.mrb[0].mxu0
    %v275 = vadd.f32 %v97, %v274
    %v276 = vpop.f32.mrb[0].mxu0
    %v277 = vadd.f32 %v101, %v276
    %278 = vmatprep.mubr.bf16.mxu0 0
    %279 = vmatmul.mubr.bf16.gmra.mrb[0].mxu0 %v188
    %v280 = vpop.f32.mrb[0].mxu0
    %v281 = vadd.f32 %v97, %v280
    %v282 = vpop.f32.mrb[0].mxu0
    %v283 = vadd.f32 %v101, %v282
    %v284 = vpop.f32.mrb[0].mxu0
    %v285 = vadd.f32 %v97, %v284
    %v286 = vpop.f32.mrb[0].mxu0
    %v287 = vadd.f32 %v101, %v286
    %288 = vmatprep.mubr.bf16.mxu0 0
    %289 = vmatmul.mubr.bf16.gmra.mrb[0].mxu0 %v191
    %v290 = vpop.f32.mrb[0].mxu0
    %v291 = vadd.f32 %v97, %v290
    %v292 = vpop.f32.mrb[0].mxu0
    %v293 = vadd.f32 %v101, %v292
    %v294 = vpop.f32.mrb[0].mxu0
    %v295 = vadd.f32 %v97, %v294
    %v296 = vpop.f32.mrb[0].mxu0
    %v297 = vadd.f32 %v101, %v296
    %298 = vmatprep.mubr.bf16.mxu0 0
    %299 = vmatmul.mubr.bf16.gmra.mrb[0].mxu0 %v194
    %v300 = vpop.f32.mrb[0].mxu0
    %v301 = vadd.f32 %v97, %v300
    %v302 = vpop.f32.mrb[0].mxu0
    %v303 = vadd.f32 %v101, %v302
    %v304 = vpop.f32.mrb[0].mxu0
    %v305 = vadd.f32 %v97, %v304
    %v306 = vpop.f32.mrb[0].mxu0
    %v307 = vadd.f32 %v101, %v306
    %308 = vdwg.mxu0
    %309 = vmatprep.subr.bf16.mxu0 %v154
    %310 = vmatpush1.bf16.msra.mxu0 %v153
    %311 = vmatprep.subr.bf16.mxu0 %v159
    %312 = vmatpush1.bf16.msra.mxu0 %v158
    %313 = vmatprep.subr.bf16.mxu0 0
    %314 = vmatpush1.bf16.msra.mxu0 0
    %315 = vmatprep.subr.bf16.mxu0 0
    %316 = vmatpush1.bf16.msra.mxu0 0
    %317 = vmatprep.subr.bf16.mxu0 0
    %318 = vmatpush1.bf16.msra.mxu0 0
    %319 = vmatprep.subr.bf16.mxu0 0
    %320 = vmatpush1.bf16.msra.mxu0 0
    %321 = vmatprep.subr.bf16.mxu0 0
    %322 = vmatpush1.bf16.msra.mxu0 0
    %323 = vmatprep.subr.bf16.mxu0 0
    %324 = vmatpush1.bf16.msra.mxu0 0
    %325 = vmatprep.subr.bf16.mxu0 0
    %326 = vmatpush1.bf16.msra.mxu0 0
    %327 = vmatprep.subr.bf16.mxu0 0
    %328 = vmatpush1.bf16.msra.mxu0 0
    %329 = vmatprep.subr.bf16.mxu0 0
    %330 = vmatpush1.bf16.msra.mxu0 0
    %331 = vmatprep.subr.bf16.mxu0 0
    %332 = vmatpush1.bf16.msra.mxu0 0
    %333 = vmatprep.subr.bf16.mxu0 0
    %334 = vmatpush1.bf16.msra.mxu0 0
    %335 = vmatprep.subr.bf16.mxu0 0
    %336 = vmatpush1.bf16.msra.mxu0 0
    %337 = vmatprep.subr.bf16.mxu0 0
    %338 = vmatpush1.bf16.msra.mxu0 0
    %339 = vmatprep.subr.bf16.mxu0 0
    %340 = vmatpush1.bf16.msra.mxu0 0
    %341 = vmatprep.mubr.bf16.mxu0 0
    %342 = vmatmul.mubr.bf16.gmra.mrb[0].mxu0 %v173
    %v343 = vpop.f32.mrb[0].mxu0
    %v344 = vadd.f32 %v105, %v343
    %v345 = vpop.f32.mrb[0].mxu0
    %v346 = vadd.f32 %v109, %v345
    %v347 = vpop.f32.mrb[0].mxu0
    %v348 = vadd.f32 %v105, %v347
    %v349 = vpop.f32.mrb[0].mxu0
    %v350 = vadd.f32 %v109, %v349
    %351 = vmatprep.mubr.bf16.mxu0 0
    %352 = vmatmul.mubr.bf16.gmra.mrb[0].mxu0 %v176
    %v353 = vpop.f32.mrb[0].mxu0
    %v354 = vadd.f32 %v105, %v353
    %v355 = vpop.f32.mrb[0].mxu0
    %v356 = vadd.f32 %v109, %v355
    %v357 = vpop.f32.mrb[0].mxu0
    %v358 = vadd.f32 %v105, %v357
    %v359 = vpop.f32.mrb[0].mxu0
    %v360 = vadd.f32 %v109, %v359
    %361 = vmatprep.mubr.bf16.mxu0 0
    %362 = vmatmul.mubr.bf16.gmra.mrb[0].mxu0 %v179
    %v363 = vpop.f32.mrb[0].mxu0
    %v364 = vadd.f32 %v105, %v363
    %v365 = vpop.f32.mrb[0].mxu0
    %v366 = vadd.f32 %v109, %v365
    %v367 = vpop.f32.mrb[0].mxu0
    %v368 = vadd.f32 %v105, %v367
    %v369 = vpop.f32.mrb[0].mxu0
    %v370 = vadd.f32 %v109, %v369
    %371 = vmatprep.mubr.bf16.mxu0 0
    %372 = vmatmul.mubr.bf16.gmra.mrb[0].mxu0 %v182
    %v373 = vpop.f32.mrb[0].mxu0
    %v374 = vadd.f32 %v105, %v373
    %v375 = vpop.f32.mrb[0].mxu0
    %v376 = vadd.f32 %v109, %v375
    %v377 = vpop.f32.mrb[0].mxu0
    %v378 = vadd.f32 %v105, %v377
    %v379 = vpop.f32.mrb[0].mxu0
    %v380 = vadd.f32 %v109, %v379
    %381 = vmatprep.mubr.bf16.mxu0 0
    %382 = vmatmul.mubr.bf16.gmra.mrb[0].mxu0 %v185
    %v383 = vpop.f32.mrb[0].mxu0
    %v384 = vadd.f32 %v105, %v383
    %v385 = vpop.f32.mrb[0].mxu0
    %v386 = vadd.f32 %v109, %v385
    %v387 = vpop.f32.mrb[0].mxu0
    %v388 = vadd.f32 %v105, %v387
    %v389 = vpop.f32.mrb[0].mxu0
    %v390 = vadd.f32 %v109, %v389
    %391 = vmatprep.mubr.bf16.mxu0 0
    %392 = vmatmul.mubr.bf16.gmra.mrb[0].mxu0 %v188
    %v393 = vpop.f32.mrb[0].mxu0
    %v394 = vadd.f32 %v105, %v393
    %v395 = vpop.f32.mrb[0].mxu0
    %v396 = vadd.f32 %v109, %v395
    %v397 = vpop.f32.mrb[0].mxu0
    %v398 = vadd.f32 %v105, %v397
    %v399 = vpop.f32.mrb[0].mxu0
    %v400 = vadd.f32 %v109, %v399
    %401 = vmatprep.mubr.bf16.mxu0 0
    %402 = vmatmul.mubr.bf16.gmra.mrb[0].mxu0 %v191
    %v403 = vpop.f32.mrb[0].mxu0
    %v404 = vadd.f32 %v105, %v403
    %v405 = vpop.f32.mrb[0].mxu0
    %v406 = vadd.f32 %v109, %v405
    %v407 = vpop.f32.mrb[0].mxu0
    %v408 = vadd.f32 %v105, %v407
    %v409 = vpop.f32.mrb[0].mxu0
    %v410 = vadd.f32 %v109, %v409
    %411 = vmatprep.mubr.bf16.mxu0 0
    %412 = vmatmul.mubr.bf16.gmra.mrb[0].mxu0 %v194
    %v413 = vpop.f32.mrb[0].mxu0
    %v414 = vadd.f32 %v105, %v413
    %v415 = vpop.f32.mrb[0].mxu0
    %v416 = vadd.f32 %v109, %v415
    %v417 = vpop.f32.mrb[0].mxu0
    %v418 = vadd.f32 %v105, %v417
    %v419 = vpop.f32.mrb[0].mxu0
    %v420 = vadd.f32 %v109, %v419
    %421 = vdwg.mxu0
    %422 = vmatprep.subr.bf16.mxu0 0
    %423 = vmatpush1.bf16.msra.mxu0 %v155
    %424 = vmatprep.subr.bf16.mxu0 0
    %425 = vmatpush1.bf16.msra.mxu0 %v160
    %426 = vmatprep.subr.bf16.mxu0 0
    %427 = vmatpush1.bf16.msra.mxu0 0
    %428 = vmatprep.subr.bf16.mxu0 0
    %429 = vmatpush1.bf16.msra.mxu0 0
    %430 = vmatprep.subr.bf16.mxu0 0
    %431 = vmatpush1.bf16.msra.mxu0 0
    %432 = vmatprep.subr.bf16.mxu0 0
    %433 = vmatpush1.bf16.msra.mxu0 0
    %434 = vmatprep.subr.bf16.mxu0 0
    %435 = vmatpush1.bf16.msra.mxu0 0
    %436 = vmatprep.subr.bf16.mxu0 0
    %437 = vmatpush1.bf16.msra.mxu0 0
    %438 = vmatprep.subr.bf16.mxu0 0
    %439 = vmatpush1.bf16.msra.mxu0 0
    %440 = vmatprep.subr.bf16.mxu0 0
    %441 = vmatpush1.bf16.msra.mxu0 0
    %442 = vmatprep.subr.bf16.mxu0 0
    %443 = vmatpush1.bf16.msra.mxu0 0
    %444 = vmatprep.subr.bf16.mxu0 0
    %445 = vmatpush1.bf16.msra.mxu0 0
    %446 = vmatprep.subr.bf16.mxu0 0
    %447 = vmatpush1.bf16.msra.mxu0 0
    %448 = vmatprep.subr.bf16.mxu0 0
    %449 = vmatpush1.bf16.msra.mxu0 0
    %450 = vmatprep.subr.bf16.mxu0 0
    %451 = vmatpush1.bf16.msra.mxu0 0
    %452 = vmatprep.subr.bf16.mxu0 0
    %453 = vmatpush1.bf16.msra.mxu0 0
    %454 = vmatprep.mubr.bf16.mxu0 0
    %455 = vmatmul.mubr.bf16.gmra.mrb[0].mxu0 %v173
    %v456 = vpop.f32.mrb[0].mxu0
    %v457 = vadd.f32 %v113, %v456
    %v458 = vpop.f32.mrb[0].mxu0
    %v459 = vpop.f32.mrb[0].mxu0
    %v460 = vadd.f32 %v113, %v459
    %v461 = vpop.f32.mrb[0].mxu0
    %462 = vmatprep.mubr.bf16.mxu0 0
    %463 = vmatmul.mubr.bf16.gmra.mrb[0].mxu0 %v176
    %v464 = vpop.f32.mrb[0].mxu0
    %v465 = vadd.f32 %v113, %v464
    %v466 = vpop.f32.mrb[0].mxu0
    %v467 = vpop.f32.mrb[0].mxu0
    %v468 = vadd.f32 %v113, %v467
    %v469 = vpop.f32.mrb[0].mxu0
    %470 = vmatprep.mubr.bf16.mxu0 0
    %471 = vmatmul.mubr.bf16.gmra.mrb[0].mxu0 %v179
    %v472 = vpop.f32.mrb[0].mxu0
    %v473 = vadd.f32 %v113, %v472
    %v474 = vpop.f32.mrb[0].mxu0
    %v475 = vpop.f32.mrb[0].mxu0
    %v476 = vadd.f32 %v113, %v475
    %v477 = vpop.f32.mrb[0].mxu0
    %478 = vmatprep.mubr.bf16.mxu0 0
    %479 = vmatmul.mubr.bf16.gmra.mrb[0].mxu0 %v182
    %v480 = vpop.f32.mrb[0].mxu0
    %v481 = vadd.f32 %v113, %v480
    %v482 = vpop.f32.mrb[0].mxu0
    %v483 = vpop.f32.mrb[0].mxu0
    %v484 = vadd.f32 %v113, %v483
    %v485 = vpop.f32.mrb[0].mxu0
    %486 = vmatprep.mubr.bf16.mxu0 0
    %487 = vmatmul.mubr.bf16.gmra.mrb[0].mxu0 %v185
    %v488 = vpop.f32.mrb[0].mxu0
    %v489 = vadd.f32 %v113, %v488
    %v490 = vpop.f32.mrb[0].mxu0
    %v491 = vpop.f32.mrb[0].mxu0
    %v492 = vadd.f32 %v113, %v491
    %v493 = vpop.f32.mrb[0].mxu0
    %494 = vmatprep.mubr.bf16.mxu0 0
    %495 = vmatmul.mubr.bf16.gmra.mrb[0].mxu0 %v188
    %v496 = vpop.f32.mrb[0].mxu0
    %v497 = vadd.f32 %v113, %v496
    %v498 = vpop.f32.mrb[0].mxu0
    %v499 = vpop.f32.mrb[0].mxu0
    %v500 = vadd.f32 %v113, %v499
    %v501 = vpop.f32.mrb[0].mxu0
    %502 = vmatprep.mubr.bf16.mxu0 0
    %503 = vmatmul.mubr.bf16.gmra.mrb[0].mxu0 %v191
    %v504 = vpop.f32.mrb[0].mxu0
    %v505 = vadd.f32 %v113, %v504
    %v506 = vpop.f32.mrb[0].mxu0
    %v507 = vpop.f32.mrb[0].mxu0
    %v508 = vadd.f32 %v113, %v507
    %v509 = vpop.f32.mrb[0].mxu0
    %510 = vmatprep.mubr.bf16.mxu0 0
    %511 = vmatmul.mubr.bf16.gmra.mrb[0].mxu0 %v194
    %v512 = vpop.f32.mrb[0].mxu0
    %v513 = vadd.f32 %v113, %v512
    %v514 = vpop.f32.mrb[0].mxu0
    %v515 = vpop.f32.mrb[0].mxu0
    %v516 = vadd.f32 %v113, %v515
    %v517 = vpop.f32.mrb[0].mxu0
    %518 = vdwg.mxu0
    %v519 = vadd.f32 %v231, %v235
    %v520 = vadd.f32 %v519, %v241
    %v521 = vadd.f32 %v520, %v245
    %v522 = vadd.f32 %v521, %v251
    %v523 = vadd.f32 %v522, %v255
    %v524 = vadd.f32 %v523, %v261
    %v525 = vadd.f32 %v524, %v265
    %v526 = vadd.f32 %v525, %v271
    %v527 = vadd.f32 %v526, %v275
    %v528 = vadd.f32 %v527, %v281
    %v529 = vadd.f32 %v528, %v285
    %v530 = vadd.f32 %v529, %v291
    %v531 = vadd.f32 %v530, %v295
    %v532 = vadd.f32 %v531, %v301
    %v533 = vadd.f32 %v532, %v305
    %v534 = vrot.slane %v533, 4
    %v535 = vadd.f32 %v533, %v534
    %v536 = vrot.slane %v535, 2
    %v537 = vadd.f32 %v535, %v536
    %v538 = vrot.slane %v537, 1
    %v539 = vadd.f32 %v537, %v538
    %v540 = vadd.f32 %v233, %v237
    %v541 = vadd.f32 %v540, %v243
    %v542 = vadd.f32 %v541, %v247
    %v543 = vadd.f32 %v542, %v253
    %v544 = vadd.f32 %v543, %v257
    %v545 = vadd.f32 %v544, %v263
    %v546 = vadd.f32 %v545, %v267
    %v547 = vadd.f32 %v546, %v273
    %v548 = vadd.f32 %v547, %v277
    %v549 = vadd.f32 %v548, %v283
    %v550 = vadd.f32 %v549, %v287
    %v551 = vadd.f32 %v550, %v293
    %v552 = vadd.f32 %v551, %v297
    %v553 = vadd.f32 %v552, %v303
    %v554 = vadd.f32 %v553, %v307
    %v555 = vrot.slane %v554, 4
    %v556 = vadd.f32 %v554, %v555
    %v557 = vrot.slane %v556, 2
    %v558 = vadd.f32 %v556, %v557
    %v559 = vrot.slane %v558, 1
    %v560 = vadd.f32 %v558, %v559
    %v561 = vadd.f32 %v344, %v348
    %v562 = vadd.f32 %v561, %v354
    %v563 = vadd.f32 %v562, %v358
    %v564 = vadd.f32 %v563, %v364
    %v565 = vadd.f32 %v564, %v368
    %v566 = vadd.f32 %v565, %v374
    %v567 = vadd.f32 %v566, %v378
    %v568 = vadd.f32 %v567, %v384
    %v569 = vadd.f32 %v568, %v388
    %v570 = vadd.f32 %v569, %v394
    %v571 = vadd.f32 %v570, %v398
    %v572 = vadd.f32 %v571, %v404
    %v573 = vadd.f32 %v572, %v408
    %v574 = vadd.f32 %v573, %v414
    %v575 = vadd.f32 %v574, %v418
    %v576 = vrot.slane %v575, 4
    %v577 = vadd.f32 %v575, %v576
    %v578 = vrot.slane %v577, 2
    %v579 = vadd.f32 %v577, %v578
    %v580 = vrot.slane %v579, 1
    %v581 = vadd.f32 %v579, %v580
    %v582 = vadd.f32 %v346, %v350
    %v583 = vadd.f32 %v582, %v356
    %v584 = vadd.f32 %v583, %v360
    %v585 = vadd.f32 %v584, %v366
    %v586 = vadd.f32 %v585, %v370
    %v587 = vadd.f32 %v586, %v376
    %v588 = vadd.f32 %v587, %v380
    %v589 = vadd.f32 %v588, %v386
    %v590 = vadd.f32 %v589, %v390
    %v591 = vadd.f32 %v590, %v396
    %v592 = vadd.f32 %v591, %v400
    %v593 = vadd.f32 %v592, %v406
    %v594 = vadd.f32 %v593, %v410
    %v595 = vadd.f32 %v594, %v416
    %v596 = vadd.f32 %v595, %v420
    %v597 = vrot.slane %v596, 4
    %v598 = vadd.f32 %v596, %v597
    %v599 = vrot.slane %v598, 2
    %v600 = vadd.f32 %v598, %v599
    %v601 = vrot.slane %v600, 1
    %v602 = vadd.f32 %v600, %v601
    %v603 = vadd.f32 %v457, %v460
    %v604 = vadd.f32 %v603, %v465
    %v605 = vadd.f32 %v604, %v468
    %v606 = vadd.f32 %v605, %v473
    %v607 = vadd.f32 %v606, %v476
    %v608 = vadd.f32 %v607, %v481
    %v609 = vadd.f32 %v608, %v484
    %v610 = vadd.f32 %v609, %v489
    %v611 = vadd.f32 %v610, %v492
    %v612 = vadd.f32 %v611, %v497
    %v613 = vadd.f32 %v612, %v500
    %v614 = vadd.f32 %v613, %v505
    %v615 = vadd.f32 %v614, %v508
    %v616 = vadd.f32 %v615, %v513
    %v617 = vadd.f32 %v616, %v516
    %v618 = vrot.slane %v617, 4
    %v619 = vadd.f32 %v617, %v618
    %v620 = vrot.slane %v619, 2
    %v621 = vadd.f32 %v619, %v620
    %v622 = vrot.slane %v621, 1
    %v623 = vadd.f32 %v621, %v622
    %v624 = vrcp.pop 128.0
    %v625 = vmul.f32 %v539, %v624
    %v626 = vmul.f32 %v560, %v624
    %v627 = vmul.f32 %v581, %v624
    %v628 = vmul.f32 %v602, %v624
    %v629 = vmul.f32 %v623, %v624
    %v630 = vsub.f32 %v231, %v625
    %v631 = vsub.f32 %v233, %v626
    %v632 = vsub.f32 %v344, %v627
    %v633 = vsub.f32 %v346, %v628
    %v634 = vsub.f32 %v457, %v629
    %v635 = vsub.f32 %v235, %v625
    %v636 = vsub.f32 %v237, %v626
    %v637 = vsub.f32 %v348, %v627
    %v638 = vsub.f32 %v350, %v628
    %v639 = vsub.f32 %v460, %v629
    %v640 = vsub.f32 %v241, %v625
    %v641 = vsub.f32 %v243, %v626
    %v642 = vsub.f32 %v354, %v627
    %v643 = vsub.f32 %v356, %v628
    %v644 = vsub.f32 %v465, %v629
    %v645 = vsub.f32 %v245, %v625
    %v646 = vsub.f32 %v247, %v626
    %v647 = vsub.f32 %v358, %v627
    %v648 = vsub.f32 %v360, %v628
    %v649 = vsub.f32 %v468, %v629
    %v650 = vsub.f32 %v251, %v625
    %v651 = vsub.f32 %v253, %v626
    %v652 = vsub.f32 %v364, %v627
    %v653 = vsub.f32 %v366, %v628
    %v654 = vsub.f32 %v473, %v629
    %v655 = vsub.f32 %v255, %v625
    %v656 = vsub.f32 %v257, %v626
    %v657 = vsub.f32 %v368, %v627
    %v658 = vsub.f32 %v370, %v628
    %v659 = vsub.f32 %v476, %v629
    %v660 = vsub.f32 %v261, %v625
    %v661 = vsub.f32 %v263, %v626
    %v662 = vsub.f32 %v374, %v627
    %v663 = vsub.f32 %v376, %v628
    %v664 = vsub.f32 %v481, %v629
    %v665 = vsub.f32 %v265, %v625
    %v666 = vsub.f32 %v267, %v626
    %v667 = vsub.f32 %v378, %v627
    %v668 = vsub.f32 %v380, %v628
    %v669 = vsub.f32 %v484, %v629
    %v670 = vsub.f32 %v271, %v625
    %v671 = vsub.f32 %v273, %v626
    %v672 = vsub.f32 %v384, %v627
    %v673 = vsub.f32 %v386, %v628
    %v674 = vsub.f32 %v489, %v629
    %v675 = vsub.f32 %v275, %v625
    %v676 = vsub.f32 %v277, %v626
    %v677 = vsub.f32 %v388, %v627
    %v678 = vsub.f32 %v390, %v628
    %v679 = vsub.f32 %v492, %v629
    %v680 = vsub.f32 %v281, %v625
    %v681 = vsub.f32 %v283, %v626
    %v682 = vsub.f32 %v394, %v627
    %v683 = vsub.f32 %v396, %v628
    %v684 = vsub.f32 %v497, %v629
    %v685 = vsub.f32 %v285, %v625
    %v686 = vsub.f32 %v287, %v626
    %v687 = vsub.f32 %v398, %v627
    %v688 = vsub.f32 %v400, %v628
    %v689 = vsub.f32 %v500, %v629
    %v690 = vsub.f32 %v291, %v625
    %v691 = vsub.f32 %v293, %v626
    %v692 = vsub.f32 %v404, %v627
    %v693 = vsub.f32 %v406, %v628
    %v694 = vsub.f32 %v505, %v629
    %v695 = vsub.f32 %v295, %v625
    %v696 = vsub.f32 %v297, %v626
    %v697 = vsub.f32 %v408, %v627
    %v698 = vsub.f32 %v410, %v628
    %v699 = vsub.f32 %v508, %v629
    %v700 = vsub.f32 %v301, %v625
    %v701 = vsub.f32 %v303, %v626
    %v702 = vsub.f32 %v414, %v627
    %v703 = vsub.f32 %v416, %v628
    %v704 = vsub.f32 %v513, %v629
    %v705 = vsub.f32 %v305, %v625
    %v706 = vsub.f32 %v307, %v626
    %v707 = vsub.f32 %v418, %v627
    %v708 = vsub.f32 %v420, %v628
    %v709 = vsub.f32 %v516, %v629
    %v710 = vmul.f32 %v630, %v630
    %v711 = vmul.f32 %v631, %v631
    %v712 = vmul.f32 %v632, %v632
    %v713 = vmul.f32 %v633, %v633
    %v714 = vmul.f32 %v634, %v634
    %v715 = vmul.f32 %v635, %v635
    %v716 = vmul.f32 %v636, %v636
    %v717 = vmul.f32 %v637, %v637
    %v718 = vmul.f32 %v638, %v638
    %v719 = vmul.f32 %v639, %v639
    %v720 = vmul.f32 %v640, %v640
    %v721 = vmul.f32 %v641, %v641
    %v722 = vmul.f32 %v642, %v642
    %v723 = vmul.f32 %v643, %v643
    %v724 = vmul.f32 %v644, %v644
    %v725 = vmul.f32 %v645, %v645
    %v726 = vmul.f32 %v646, %v646
    %v727 = vmul.f32 %v647, %v647
    %v728 = vmul.f32 %v648, %v648
    %v729 = vmul.f32 %v649, %v649
    %v730 = vmul.f32 %v650, %v650
    %v731 = vmul.f32 %v651, %v651
    %v732 = vmul.f32 %v652, %v652
    %v733 = vmul.f32 %v653, %v653
    %v734 = vmul.f32 %v654, %v654
    %v735 = vmul.f32 %v655, %v655
    %v736 = vmul.f32 %v656, %v656
    %v737 = vmul.f32 %v657, %v657
    %v738 = vmul.f32 %v658, %v658
    %v739 = vmul.f32 %v659, %v659
    %v740 = vmul.f32 %v660, %v660
    %v741 = vmul.f32 %v661, %v661
    %v742 = vmul.f32 %v662, %v662
    %v743 = vmul.f32 %v663, %v663
    %v744 = vmul.f32 %v664, %v664
    %v745 = vmul.f32 %v665, %v665
    %v746 = vmul.f32 %v666, %v666
    %v747 = vmul.f32 %v667, %v667
    %v748 = vmul.f32 %v668, %v668
    %v749 = vmul.f32 %v669, %v669
    %v750 = vmul.f32 %v670, %v670
    %v751 = vmul.f32 %v671, %v671
    %v752 = vmul.f32 %v672, %v672
    %v753 = vmul.f32 %v673, %v673
    %v754 = vmul.f32 %v674, %v674
    %v755 = vmul.f32 %v675, %v675
    %v756 = vmul.f32 %v676, %v676
    %v757 = vmul.f32 %v677, %v677
    %v758 = vmul.f32 %v678, %v678
    %v759 = vmul.f32 %v679, %v679
    %v760 = vmul.f32 %v680, %v680
    %v761 = vmul.f32 %v681, %v681
    %v762 = vmul.f32 %v682, %v682
    %v763 = vmul.f32 %v683, %v683
    %v764 = vmul.f32 %v684, %v684
    %v765 = vmul.f32 %v685, %v685
    %v766 = vmul.f32 %v686, %v686
    %v767 = vmul.f32 %v687, %v687
    %v768 = vmul.f32 %v688, %v688
    %v769 = vmul.f32 %v689, %v689
    %v770 = vmul.f32 %v690, %v690
    %v771 = vmul.f32 %v691, %v691
    %v772 = vmul.f32 %v692, %v692
    %v773 = vmul.f32 %v693, %v693
    %v774 = vmul.f32 %v694, %v694
    %v775 = vmul.f32 %v695, %v695
    %v776 = vmul.f32 %v696, %v696
    %v777 = vmul.f32 %v697, %v697
    %v778 = vmul.f32 %v698, %v698
    %v779 = vmul.f32 %v699, %v699
    %v780 = vmul.f32 %v700, %v700
    %v781 = vmul.f32 %v701, %v701
    %v782 = vmul.f32 %v702, %v702
    %v783 = vmul.f32 %v703, %v703
    %v784 = vmul.f32 %v704, %v704
    %v785 = vmul.f32 %v705, %v705
    %v786 = vmul.f32 %v706, %v706
    %v787 = vmul.f32 %v707, %v707
    %v788 = vmul.f32 %v708, %v708
    %v789 = vmul.f32 %v709, %v709
    %v790 = vadd.f32 %v710, %v715
    %v791 = vadd.f32 %v790, %v720
    %v792 = vadd.f32 %v791, %v725
    %v793 = vadd.f32 %v792, %v730
    %v794 = vadd.f32 %v793, %v735
    %v795 = vadd.f32 %v794, %v740
    %v796 = vadd.f32 %v795, %v745
    %v797 = vadd.f32 %v796, %v750
    %v798 = vadd.f32 %v797, %v755
    %v799 = vadd.f32 %v798, %v760
    %v800 = vadd.f32 %v799, %v765
    %v801 = vadd.f32 %v800, %v770
    %v802 = vadd.f32 %v801, %v775
    %v803 = vadd.f32 %v802, %v780
    %v804 = vadd.f32 %v803, %v785
    %v805 = vrot.slane %v804, 4
    %v806 = vadd.f32 %v804, %v805
    %v807 = vrot.slane %v806, 2
    %v808 = vadd.f32 %v806, %v807
    %v809 = vrot.slane %v808, 1
    %v810 = vadd.f32 %v808, %v809
    %v811 = vadd.f32 %v711, %v716
    %v812 = vadd.f32 %v811, %v721
    %v813 = vadd.f32 %v812, %v726
    %v814 = vadd.f32 %v813, %v731
    %v815 = vadd.f32 %v814, %v736
    %v816 = vadd.f32 %v815, %v741
    %v817 = vadd.f32 %v816, %v746
    %v818 = vadd.f32 %v817, %v751
    %v819 = vadd.f32 %v818, %v756
    %v820 = vadd.f32 %v819, %v761
    %v821 = vadd.f32 %v820, %v766
    %v822 = vadd.f32 %v821, %v771
    %v823 = vadd.f32 %v822, %v776
    %v824 = vadd.f32 %v823, %v781
    %v825 = vadd.f32 %v824, %v786
    %v826 = vrot.slane %v825, 4
    %v827 = vadd.f32 %v825, %v826
    %v828 = vrot.slane %v827, 2
    %v829 = vadd.f32 %v827, %v828
    %v830 = vrot.slane %v829, 1
    %v831 = vadd.f32 %v829, %v830
    %v832 = vadd.f32 %v712, %v717
    %v833 = vadd.f32 %v832, %v722
    %v834 = vadd.f32 %v833, %v727
    %v835 = vadd.f32 %v834, %v732
    %v836 = vadd.f32 %v835, %v737
    %v837 = vadd.f32 %v836, %v742
    %v838 = vadd.f32 %v837, %v747
    %v839 = vadd.f32 %v838, %v752
    %v840 = vadd.f32 %v839, %v757
    %v841 = vadd.f32 %v840, %v762
    %v842 = vadd.f32 %v841, %v767
    %v843 = vadd.f32 %v842, %v772
    %v844 = vadd.f32 %v843, %v777
    %v845 = vadd.f32 %v844, %v782
    %v846 = vadd.f32 %v845, %v787
    %v847 = vrot.slane %v846, 4
    %v848 = vadd.f32 %v846, %v847
    %v849 = vrot.slane %v848, 2
    %v850 = vadd.f32 %v848, %v849
    %v851 = vrot.slane %v850, 1
    %v852 = vadd.f32 %v850, %v851
    %v853 = vadd.f32 %v713, %v718
    %v854 = vadd.f32 %v853, %v723
    %v855 = vadd.f32 %v854, %v728
    %v856 = vadd.f32 %v855, %v733
    %v857 = vadd.f32 %v856, %v738
    %v858 = vadd.f32 %v857, %v743
    %v859 = vadd.f32 %v858, %v748
    %v860 = vadd.f32 %v859, %v753
    %v861 = vadd.f32 %v860, %v758
    %v862 = vadd.f32 %v861, %v763
    %v863 = vadd.f32 %v862, %v768
    %v864 = vadd.f32 %v863, %v773
    %v865 = vadd.f32 %v864, %v778
    %v866 = vadd.f32 %v865, %v783
    %v867 = vadd.f32 %v866, %v788
    %v868 = vrot.slane %v867, 4
    %v869 = vadd.f32 %v867, %v868
    %v870 = vrot.slane %v869, 2
    %v871 = vadd.f32 %v869, %v870
    %v872 = vrot.slane %v871, 1
    %v873 = vadd.f32 %v871, %v872
    %v874 = vadd.f32 %v714, %v719
    %v875 = vadd.f32 %v874, %v724
    %v876 = vadd.f32 %v875, %v729
    %v877 = vadd.f32 %v876, %v734
    %v878 = vadd.f32 %v877, %v739
    %v879 = vadd.f32 %v878, %v744
    %v880 = vadd.f32 %v879, %v749
    %v881 = vadd.f32 %v880, %v754
    %v882 = vadd.f32 %v881, %v759
    %v883 = vadd.f32 %v882, %v764
    %v884 = vadd.f32 %v883, %v769
    %v885 = vadd.f32 %v884, %v774
    %v886 = vadd.f32 %v885, %v779
    %v887 = vadd.f32 %v886, %v784
    %v888 = vadd.f32 %v887, %v789
    %v889 = vrot.slane %v888, 4
    %v890 = vadd.f32 %v888, %v889
    %v891 = vrot.slane %v890, 2
    %v892 = vadd.f32 %v890, %v891
    %v893 = vrot.slane %v892, 1
    %v894 = vadd.f32 %v892, %v893
    %v895 = vmul.f32 %v810, %v624
    %v896 = vmul.f32 %v831, %v624
    %v897 = vmul.f32 %v852, %v624
    %v898 = vmul.f32 %v873, %v624
    %v899 = vmul.f32 %v894, %v624
    %v900 = vadd.f32 %v895, 0.001
    %v901 = vadd.f32 %v896, 0.001
    %v902 = vadd.f32 %v897, 0.001
    %v903 = vadd.f32 %v898, 0.001
    %v904 = vadd.f32 %v899, 0.001
    %v905 = vrsqrt.pop %v900
    %v906 = vrsqrt.pop %v901
    %v907 = vrsqrt.pop %v902
    %v908 = vrsqrt.pop %v903
    %v909 = vrsqrt.pop %v904
    %v910 = vmul.f32 %v630, %v905
    %v911 = vmul.f32 %v631, %v906
    %v912 = vmul.f32 %v632, %v907
    %v913 = vmul.f32 %v633, %v908
    %v914 = vmul.f32 %v634, %v909
    %v915 = vmul.f32 %v635, %v905
    %v916 = vmul.f32 %v636, %v906
    %v917 = vmul.f32 %v637, %v907
    %v918 = vmul.f32 %v638, %v908
    %v919 = vmul.f32 %v639, %v909
    %v920 = vmul.f32 %v640, %v905
    %v921 = vmul.f32 %v641, %v906
    %v922 = vmul.f32 %v642, %v907
    %v923 = vmul.f32 %v643, %v908
    %v924 = vmul.f32 %v644, %v909
    %v925 = vmul.f32 %v645, %v905
    %v926 = vmul.f32 %v646, %v906
    %v927 = vmul.f32 %v647, %v907
    %v928 = vmul.f32 %v648, %v908
    %v929 = vmul.f32 %v649, %v909
    %v930 = vmul.f32 %v650, %v905
    %v931 = vmul.f32 %v651, %v906
    %v932 = vmul.f32 %v652, %v907
    %v933 = vmul.f32 %v653, %v908
    %v934 = vmul.f32 %v654, %v909
    %v935 = vmul.f32 %v655, %v905
    %v936 = vmul.f32 %v656, %v906
    %v937 = vmul.f32 %v657, %v907
    %v938 = vmul.f32 %v658, %v908
    %v939 = vmul.f32 %v659, %v909
    %v940 = vmul.f32 %v660, %v905
    %v941 = vmul.f32 %v661, %v906
    %v942 = vmul.f32 %v662, %v907
    %v943 = vmul.f32 %v663, %v908
    %v944 = vmul.f32 %v664, %v909
    %v945 = vmul.f32 %v665, %v905
    %v946 = vmul.f32 %v666, %v906
    %v947 = vmul.f32 %v667, %v907
    %v948 = vmul.f32 %v668, %v908
    %v949 = vmul.f32 %v669, %v909
    %v950 = vmul.f32 %v670, %v905
    %v951 = vmul.f32 %v671, %v906
    %v952 = vmul.f32 %v672, %v907
    %v953 = vmul.f32 %v673, %v908
    %v954 = vmul.f32 %v674, %v909
    %v955 = vmul.f32 %v675, %v905
    %v956 = vmul.f32 %v676, %v906
    %v957 = vmul.f32 %v677, %v907
    %v958 = vmul.f32 %v678, %v908
    %v959 = vmul.f32 %v679, %v909
    %v960 = vmul.f32 %v680, %v905
    %v961 = vmul.f32 %v681, %v906
    %v962 = vmul.f32 %v682, %v907
    %v963 = vmul.f32 %v683, %v908
    %v964 = vmul.f32 %v684, %v909
    %v965 = vmul.f32 %v685, %v905
    %v966 = vmul.f32 %v686, %v906
    %v967 = vmul.f32 %v687, %v907
    %v968 = vmul.f32 %v688, %v908
    %v969 = vmul.f32 %v689, %v909
    %v970 = vmul.f32 %v690, %v905
    %v971 = vmul.f32 %v691, %v906
    %v972 = vmul.f32 %v692, %v907
    %v973 = vmul.f32 %v693, %v908
    %v974 = vmul.f32 %v694, %v909
    %v975 = vmul.f32 %v695, %v905
    %v976 = vmul.f32 %v696, %v906
    %v977 = vmul.f32 %v697, %v907
    %v978 = vmul.f32 %v698, %v908
    %v979 = vmul.f32 %v699, %v909
    %v980 = vmul.f32 %v700, %v905
    %v981 = vmul.f32 %v701, %v906
    %v982 = vmul.f32 %v702, %v907
    %v983 = vmul.f32 %v703, %v908
    %v984 = vmul.f32 %v704, %v909
    %v985 = vmul.f32 %v705, %v905
    %v986 = vmul.f32 %v706, %v906
    %v987 = vmul.f32 %v707, %v907
    %v988 = vmul.f32 %v708, %v908
    %v989 = vmul.f32 %v709, %v909
    %vm990 = vcmp.gt.f32.partialorder %v910, 0.0
    %vm991 = vcmp.gt.f32.partialorder %v911, 0.0
    %vm992 = vcmp.gt.f32.partialorder %v912, 0.0
    %vm993 = vcmp.gt.f32.partialorder %v913, 0.0
    %vm994 = vcmp.gt.f32.partialorder %v914, 0.0
    %vm995 = vcmp.gt.f32.partialorder %v915, 0.0
    %vm996 = vcmp.gt.f32.partialorder %v916, 0.0
    %vm997 = vcmp.gt.f32.partialorder %v917, 0.0
    %vm998 = vcmp.gt.f32.partialorder %v918, 0.0
    %vm999 = vcmp.gt.f32.partialorder %v919, 0.0
    %vm1000 = vcmp.gt.f32.partialorder %v920, 0.0
    %vm1001 = vcmp.gt.f32.partialorder %v921, 0.0
    %vm1002 = vcmp.gt.f32.partialorder %v922, 0.0
    %vm1003 = vcmp.gt.f32.partialorder %v923, 0.0
    %vm1004 = vcmp.gt.f32.partialorder %v924, 0.0
    %vm1005 = vcmp.gt.f32.partialorder %v925, 0.0
    %vm1006 = vcmp.gt.f32.partialorder %v926, 0.0
    %vm1007 = vcmp.gt.f32.partialorder %v927, 0.0
    %vm1008 = vcmp.gt.f32.partialorder %v928, 0.0
    %vm1009 = vcmp.gt.f32.partialorder %v929, 0.0
    %vm1010 = vcmp.gt.f32.partialorder %v930, 0.0
    %vm1011 = vcmp.gt.f32.partialorder %v931, 0.0
    %vm1012 = vcmp.gt.f32.partialorder %v932, 0.0
    %vm1013 = vcmp.gt.f32.partialorder %v933, 0.0
    %vm1014 = vcmp.gt.f32.partialorder %v934, 0.0
    %vm1015 = vcmp.gt.f32.partialorder %v935, 0.0
    %vm1016 = vcmp.gt.f32.partialorder %v936, 0.0
    %vm1017 = vcmp.gt.f32.partialorder %v937, 0.0
    %vm1018 = vcmp.gt.f32.partialorder %v938, 0.0
    %vm1019 = vcmp.gt.f32.partialorder %v939, 0.0
    %vm1020 = vcmp.gt.f32.partialorder %v940, 0.0
    %vm1021 = vcmp.gt.f32.partialorder %v941, 0.0
    %vm1022 = vcmp.gt.f32.partialorder %v942, 0.0
    %vm1023 = vcmp.gt.f32.partialorder %v943, 0.0
    %vm1024 = vcmp.gt.f32.partialorder %v944, 0.0
    %vm1025 = vcmp.gt.f32.partialorder %v945, 0.0
    %vm1026 = vcmp.gt.f32.partialorder %v946, 0.0
    %vm1027 = vcmp.gt.f32.partialorder %v947, 0.0
    %vm1028 = vcmp.gt.f32.partialorder %v948, 0.0
    %vm1029 = vcmp.gt.f32.partialorder %v949, 0.0
    %vm1030 = vcmp.gt.f32.partialorder %v950, 0.0
    %vm1031 = vcmp.gt.f32.partialorder %v951, 0.0
    %vm1032 = vcmp.gt.f32.partialorder %v952, 0.0
    %vm1033 = vcmp.gt.f32.partialorder %v953, 0.0
    %vm1034 = vcmp.gt.f32.partialorder %v954, 0.0
    %vm1035 = vcmp.gt.f32.partialorder %v955, 0.0
    %vm1036 = vcmp.gt.f32.partialorder %v956, 0.0
    %vm1037 = vcmp.gt.f32.partialorder %v957, 0.0
    %vm1038 = vcmp.gt.f32.partialorder %v958, 0.0
    %vm1039 = vcmp.gt.f32.partialorder %v959, 0.0
    %vm1040 = vcmp.gt.f32.partialorder %v960, 0.0
    %vm1041 = vcmp.gt.f32.partialorder %v961, 0.0
    %vm1042 = vcmp.gt.f32.partialorder %v962, 0.0
    %vm1043 = vcmp.gt.f32.partialorder %v963, 0.0
    %vm1044 = vcmp.gt.f32.partialorder %v964, 0.0
    %vm1045 = vcmp.gt.f32.partialorder %v965, 0.0
    %vm1046 = vcmp.gt.f32.partialorder %v966, 0.0
    %vm1047 = vcmp.gt.f32.partialorder %v967, 0.0
    %vm1048 = vcmp.gt.f32.partialorder %v968, 0.0
    %vm1049 = vcmp.gt.f32.partialorder %v969, 0.0
    %vm1050 = vcmp.gt.f32.partialorder %v970, 0.0
    %vm1051 = vcmp.gt.f32.partialorder %v971, 0.0
    %vm1052 = vcmp.gt.f32.partialorder %v972, 0.0
    %vm1053 = vcmp.gt.f32.partialorder %v973, 0.0
    %vm1054 = vcmp.gt.f32.partialorder %v974, 0.0
    %vm1055 = vcmp.gt.f32.partialorder %v975, 0.0
    %vm1056 = vcmp.gt.f32.partialorder %v976, 0.0
    %vm1057 = vcmp.gt.f32.partialorder %v977, 0.0
    %vm1058 = vcmp.gt.f32.partialorder %v978, 0.0
    %vm1059 = vcmp.gt.f32.partialorder %v979, 0.0
    %vm1060 = vcmp.gt.f32.partialorder %v980, 0.0
    %vm1061 = vcmp.gt.f32.partialorder %v981, 0.0
    %vm1062 = vcmp.gt.f32.partialorder %v982, 0.0
    %vm1063 = vcmp.gt.f32.partialorder %v983, 0.0
    %vm1064 = vcmp.gt.f32.partialorder %v984, 0.0
    %vm1065 = vcmp.gt.f32.partialorder %v985, 0.0
    %vm1066 = vcmp.gt.f32.partialorder %v986, 0.0
    %vm1067 = vcmp.gt.f32.partialorder %v987, 0.0
    %vm1068 = vcmp.gt.f32.partialorder %v988, 0.0
    %vm1069 = vcmp.gt.f32.partialorder %v989, 0.0
    %v1070 = vmul.f32 %v910, 0.01
    %v1071 = vmul.f32 %v911, 0.01
    %v1072 = vmul.f32 %v912, 0.01
    %v1073 = vmul.f32 %v913, 0.01
    %v1074 = vmul.f32 %v914, 0.01
    %v1075 = vmul.f32 %v915, 0.01
    %v1076 = vmul.f32 %v916, 0.01
    %v1077 = vmul.f32 %v917, 0.01
    %v1078 = vmul.f32 %v918, 0.01
    %v1079 = vmul.f32 %v919, 0.01
    %v1080 = vmul.f32 %v920, 0.01
    %v1081 = vmul.f32 %v921, 0.01
    %v1082 = vmul.f32 %v922, 0.01
    %v1083 = vmul.f32 %v923, 0.01
    %v1084 = vmul.f32 %v924, 0.01
    %v1085 = vmul.f32 %v925, 0.01
    %v1086 = vmul.f32 %v926, 0.01
    %v1087 = vmul.f32 %v927, 0.01
    %v1088 = vmul.f32 %v928, 0.01
    %v1089 = vmul.f32 %v929, 0.01
    %v1090 = vmul.f32 %v930, 0.01
    %v1091 = vmul.f32 %v931, 0.01
    %v1092 = vmul.f32 %v932, 0.01
    %v1093 = vmul.f32 %v933, 0.01
    %v1094 = vmul.f32 %v934, 0.01
    %v1095 = vmul.f32 %v935, 0.01
    %v1096 = vmul.f32 %v936, 0.01
    %v1097 = vmul.f32 %v937, 0.01
    %v1098 = vmul.f32 %v938, 0.01
    %v1099 = vmul.f32 %v939, 0.01
    %v1100 = vmul.f32 %v940, 0.01
    %v1101 = vmul.f32 %v941, 0.01
    %v1102 = vmul.f32 %v942, 0.01
    %v1103 = vmul.f32 %v943, 0.01
    %v1104 = vmul.f32 %v944, 0.01
    %v1105 = vmul.f32 %v945, 0.01
    %v1106 = vmul.f32 %v946, 0.01
    %v1107 = vmul.f32 %v947, 0.01
    %v1108 = vmul.f32 %v948, 0.01
    %v1109 = vmul.f32 %v949, 0.01
    %v1110 = vmul.f32 %v950, 0.01
    %v1111 = vmul.f32 %v951, 0.01
    %v1112 = vmul.f32 %v952, 0.01
    %v1113 = vmul.f32 %v953, 0.01
    %v1114 = vmul.f32 %v954, 0.01
    %v1115 = vmul.f32 %v955, 0.01
    %v1116 = vmul.f32 %v956, 0.01
    %v1117 = vmul.f32 %v957, 0.01
    %v1118 = vmul.f32 %v958, 0.01
    %v1119 = vmul.f32 %v959, 0.01
    %v1120 = vmul.f32 %v960, 0.01
    %v1121 = vmul.f32 %v961, 0.01
    %v1122 = vmul.f32 %v962, 0.01
    %v1123 = vmul.f32 %v963, 0.01
    %v1124 = vmul.f32 %v964, 0.01
    %v1125 = vmul.f32 %v965, 0.01
    %v1126 = vmul.f32 %v966, 0.01
    %v1127 = vmul.f32 %v967, 0.01
    %v1128 = vmul.f32 %v968, 0.01
    %v1129 = vmul.f32 %v969, 0.01
    %v1130 = vmul.f32 %v970, 0.01
    %v1131 = vmul.f32 %v971, 0.01
    %v1132 = vmul.f32 %v972, 0.01
    %v1133 = vmul.f32 %v973, 0.01
    %v1134 = vmul.f32 %v974, 0.01
    %v1135 = vmul.f32 %v975, 0.01
    %v1136 = vmul.f32 %v976, 0.01
    %v1137 = vmul.f32 %v977, 0.01
    %v1138 = vmul.f32 %v978, 0.01
    %v1139 = vmul.f32 %v979, 0.01
    %v1140 = vmul.f32 %v980, 0.01
    %v1141 = vmul.f32 %v981, 0.01
    %v1142 = vmul.f32 %v982, 0.01
    %v1143 = vmul.f32 %v983, 0.01
    %v1144 = vmul.f32 %v984, 0.01
    %v1145 = vmul.f32 %v985, 0.01
    %v1146 = vmul.f32 %v986, 0.01
    %v1147 = vmul.f32 %v987, 0.01
    %v1148 = vmul.f32 %v988, 0.01
    %v1149 = vmul.f32 %v989, 0.01
    %v1150 = vsel %vm990, %v910, %v1070
    %v1151 = vsel %vm991, %v911, %v1071
    %v1152 = vsel %vm992, %v912, %v1072
    %v1153 = vsel %vm993, %v913, %v1073
    %v1154 = vsel %vm994, %v914, %v1074
    %v1155 = vsel %vm995, %v915, %v1075
    %v1156 = vsel %vm996, %v916, %v1076
    %v1157 = vsel %vm997, %v917, %v1077
    %v1158 = vsel %vm998, %v918, %v1078
    %v1159 = vsel %vm999, %v919, %v1079
    %v1160 = vsel %vm1000, %v920, %v1080
    %v1161 = vsel %vm1001, %v921, %v1081
    %v1162 = vsel %vm1002, %v922, %v1082
    %v1163 = vsel %vm1003, %v923, %v1083
    %v1164 = vsel %vm1004, %v924, %v1084
    %v1165 = vsel %vm1005, %v925, %v1085
    %v1166 = vsel %vm1006, %v926, %v1086
    %v1167 = vsel %vm1007, %v927, %v1087
    %v1168 = vsel %vm1008, %v928, %v1088
    %v1169 = vsel %vm1009, %v929, %v1089
    %v1170 = vsel %vm1010, %v930, %v1090
    %v1171 = vsel %vm1011, %v931, %v1091
    %v1172 = vsel %vm1012, %v932, %v1092
    %v1173 = vsel %vm1013, %v933, %v1093
    %v1174 = vsel %vm1014, %v934, %v1094
    %v1175 = vsel %vm1015, %v935, %v1095
    %v1176 = vsel %vm1016, %v936, %v1096
    %v1177 = vsel %vm1017, %v937, %v1097
    %v1178 = vsel %vm1018, %v938, %v1098
    %v1179 = vsel %vm1019, %v939, %v1099
    %v1180 = vsel %vm1020, %v940, %v1100
    %v1181 = vsel %vm1021, %v941, %v1101
    %v1182 = vsel %vm1022, %v942, %v1102
    %v1183 = vsel %vm1023, %v943, %v1103
    %v1184 = vsel %vm1024, %v944, %v1104
    %v1185 = vsel %vm1025, %v945, %v1105
    %v1186 = vsel %vm1026, %v946, %v1106
    %v1187 = vsel %vm1027, %v947, %v1107
    %v1188 = vsel %vm1028, %v948, %v1108
    %v1189 = vsel %vm1029, %v949, %v1109
    %v1190 = vsel %vm1030, %v950, %v1110
    %v1191 = vsel %vm1031, %v951, %v1111
    %v1192 = vsel %vm1032, %v952, %v1112
    %v1193 = vsel %vm1033, %v953, %v1113
    %v1194 = vsel %vm1034, %v954, %v1114
    %v1195 = vsel %vm1035, %v955, %v1115
    %v1196 = vsel %vm1036, %v956, %v1116
    %v1197 = vsel %vm1037, %v957, %v1117
    %v1198 = vsel %vm1038, %v958, %v1118
    %v1199 = vsel %vm1039, %v959, %v1119
    %v1200 = vsel %vm1040, %v960, %v1120
    %v1201 = vsel %vm1041, %v961, %v1121
    %v1202 = vsel %vm1042, %v962, %v1122
    %v1203 = vsel %vm1043, %v963, %v1123
    %v1204 = vsel %vm1044, %v964, %v1124
    %v1205 = vsel %vm1045, %v965, %v1125
    %v1206 = vsel %vm1046, %v966, %v1126
    %v1207 = vsel %vm1047, %v967, %v1127
    %v1208 = vsel %vm1048, %v968, %v1128
    %v1209 = vsel %vm1049, %v969, %v1129
    %v1210 = vsel %vm1050, %v970, %v1130
    %v1211 = vsel %vm1051, %v971, %v1131
    %v1212 = vsel %vm1052, %v972, %v1132
    %v1213 = vsel %vm1053, %v973, %v1133
    %v1214 = vsel %vm1054, %v974, %v1134
    %v1215 = vsel %vm1055, %v975, %v1135
    %v1216 = vsel %vm1056, %v976, %v1136
    %v1217 = vsel %vm1057, %v977, %v1137
    %v1218 = vsel %vm1058, %v978, %v1138
    %v1219 = vsel %vm1059, %v979, %v1139
    %v1220 = vsel %vm1060, %v980, %v1140
    %v1221 = vsel %vm1061, %v981, %v1141
    %v1222 = vsel %vm1062, %v982, %v1142
    %v1223 = vsel %vm1063, %v983, %v1143
    %v1224 = vsel %vm1064, %v984, %v1144
    %v1225 = vsel %vm1065, %v985, %v1145
    %v1226 = vsel %vm1066, %v986, %v1146
    %v1227 = vsel %vm1067, %v987, %v1147
    %v1228 = vsel %vm1068, %v988, %v1148
    %v1229 = vsel %vm1069, %v989, %v1149
    %v1230 = vpack.c.bf16 %v1155, %v1150
    %v1231 = vpack.c.bf16 %v1156, %v1151
    %v1232 = vpack.c.bf16 %v1157, %v1152
    %v1233 = vpack.c.bf16 %v1158, %v1153
    %v1234 = vpack.c.bf16 %v1159, %v1154
    %v1235 = vpack.c.bf16 %v1165, %v1160
    %v1236 = vpack.c.bf16 %v1166, %v1161
    %v1237 = vpack.c.bf16 %v1167, %v1162
    %v1238 = vpack.c.bf16 %v1168, %v1163
    %v1239 = vpack.c.bf16 %v1169, %v1164
    %v1240 = vpack.c.bf16 %v1175, %v1170
    %v1241 = vpack.c.bf16 %v1176, %v1171
    %v1242 = vpack.c.bf16 %v1177, %v1172
    %v1243 = vpack.c.bf16 %v1178, %v1173
    %v1244 = vpack.c.bf16 %v1179, %v1174
    %v1245 = vpack.c.bf16 %v1185, %v1180
    %v1246 = vpack.c.bf16 %v1186, %v1181
    %v1247 = vpack.c.bf16 %v1187, %v1182
    %v1248 = vpack.c.bf16 %v1188, %v1183
    %v1249 = vpack.c.bf16 %v1189, %v1184
    %v1250 = vpack.c.bf16 %v1195, %v1190
    %v1251 = vpack.c.bf16 %v1196, %v1191
    %v1252 = vpack.c.bf16 %v1197, %v1192
    %v1253 = vpack.c.bf16 %v1198, %v1193
    %v1254 = vpack.c.bf16 %v1199, %v1194
    %v1255 = vpack.c.bf16 %v1205, %v1200
    %v1256 = vpack.c.bf16 %v1206, %v1201
    %v1257 = vpack.c.bf16 %v1207, %v1202
    %v1258 = vpack.c.bf16 %v1208, %v1203
    %v1259 = vpack.c.bf16 %v1209, %v1204
    %v1260 = vpack.c.bf16 %v1215, %v1210
    %v1261 = vpack.c.bf16 %v1216, %v1211
    %v1262 = vpack.c.bf16 %v1217, %v1212
    %v1263 = vpack.c.bf16 %v1218, %v1213
    %v1264 = vpack.c.bf16 %v1219, %v1214
    %v1265 = vpack.c.bf16 %v1225, %v1220
    %v1266 = vpack.c.bf16 %v1226, %v1221
    %v1267 = vpack.c.bf16 %v1227, %v1222
    %v1268 = vpack.c.bf16 %v1228, %v1223
    %v1269 = vpack.c.bf16 %v1229, %v1224
    %v1270 = vld [vmem:[#allocation2] sm:$0xff]
    %v1271 = vld [vmem:[#allocation2 + $0x8] sm:$0xf]
    %v1272 = vld [vmem:[#allocation2 + $0xc] sm:$0xff]
    %v1273 = vld [vmem:[#allocation2 + $0x14] sm:$0xf]
    %v1274 = vld [vmem:[#allocation2 + $0x18] sm:$0xff]
    %v1275 = vld [vmem:[#allocation2 + $0x20] sm:$0xf]
    %v1276 = vld [vmem:[#allocation2 + $0x24] sm:$0xff]
    %v1277 = vld [vmem:[#allocation2 + $0x2c] sm:$0xf]
    %v1278 = vld [vmem:[#allocation2 + $0x30] sm:$0xff]
    %v1279 = vld [vmem:[#allocation2 + $0x38] sm:$0xf]
    %v1280 = vld [vmem:[#allocation2 + $0x3c] sm:$0xff]
    %v1281 = vld [vmem:[#allocation2 + $0x44] sm:$0xf]
    %v1282 = vld [vmem:[#allocation2 + $0x48] sm:$0xff]
    %v1283 = vld [vmem:[#allocation2 + $0x50] sm:$0xf]
    %v1284 = vld [vmem:[#allocation2 + $0x54] sm:$0xff]
    %v1285 = vld [vmem:[#allocation2 + $0x5c] sm:$0xf]
    %v1286 = vld [vmem:[#allocation2 + $0x60] sm:$0xff]
    %v1287 = vld [vmem:[#allocation2 + $0x68] sm:$0xf]
    %v1288 = vld [vmem:[#allocation2 + $0x6c] sm:$0xff]
    %v1289 = vld [vmem:[#allocation2 + $0x74] sm:$0xf]
    %v1290 = vld [vmem:[#allocation2 + $0x78] sm:$0xff]
    %v1291 = vld [vmem:[#allocation2 + $0x80] sm:$0xf]
    %v1292 = vld [vmem:[#allocation2 + $0x84] sm:$0xff]
    %v1293 = vld [vmem:[#allocation2 + $0x8c] sm:$0xf]
    %v1294 = vld [vmem:[#allocation2 + $0x90] sm:$0xff]
    %v1295 = vld [vmem:[#allocation2 + $0x98] sm:$0xf]
    %v1296 = vld [vmem:[#allocation2 + $0x9c] sm:$0xff]
    %v1297 = vld [vmem:[#allocation2 + $0xa4] sm:$0xf]
    %v1298 = vld [vmem:[#allocation2 + $0xa8] sm:$0xff]
    %v1299 = vld [vmem:[#allocation2 + $0xb0] sm:$0xf]
    %v1300 = vld [vmem:[#allocation2 + $0xb4] sm:$0xff]
    %v1301 = vld [vmem:[#allocation2 + $0xbc] sm:$0xf]
    %v1302 = vld [vmem:[#allocation2 + $0xc0] sm:$0xff]
    %v1303 = vld [vmem:[#allocation2 + $0xc8] sm:$0xf]
    %v1304 = vld [vmem:[#allocation2 + $0xcc] sm:$0xff]
    %v1305 = vld [vmem:[#allocation2 + $0xd4] sm:$0xf]
    %v1306 = vld [vmem:[#allocation2 + $0xd8] sm:$0xff]
    %v1307 = vld [vmem:[#allocation2 + $0xe0] sm:$0xf]
    %v1308 = vld [vmem:[#allocation2 + $0xe4] sm:$0xff]
    %v1309 = vld [vmem:[#allocation2 + $0xec] sm:$0xf]
    %v1310 = vld [vmem:[#allocation2 + $0xf0] sm:$0xff]
    %v1311 = vld [vmem:[#allocation2 + $0xf8] sm:$0xf]
    %v1312 = vld [vmem:[#allocation2 + $0xfc] sm:$0xff]
    %v1313 = vld [vmem:[#allocation2 + $0x104] sm:$0xf]
    %v1314 = vld [vmem:[#allocation2 + $0x108] sm:$0xff]
    %v1315 = vld [vmem:[#allocation2 + $0x110] sm:$0xf]
    %v1316 = vld [vmem:[#allocation2 + $0x114] sm:$0xff]
    %v1317 = vld [vmem:[#allocation2 + $0x11c] sm:$0xf]
    %v1318 = vld [vmem:[#allocation2 + $0x120] sm:$0xff]
    %v1319 = vld [vmem:[#allocation2 + $0x128] sm:$0xf]
    %v1320 = vld [vmem:[#allocation2 + $0x12c] sm:$0xff]
    %v1321 = vld [vmem:[#allocation2 + $0x134] sm:$0xf]
    %v1322 = vld [vmem:[#allocation2 + $0x138] sm:$0xff]
    %v1323 = vld [vmem:[#allocation2 + $0x140] sm:$0xf]
    %v1324 = vld [vmem:[#allocation2 + $0x144] sm:$0xff]
    %v1325 = vld [vmem:[#allocation2 + $0x14c] sm:$0xf]
    %v1326 = vld [vmem:[#allocation2 + $0x150] sm:$0xff]
    %v1327 = vld [vmem:[#allocation2 + $0x158] sm:$0xf]
    %v1328 = vld [vmem:[#allocation2 + $0x15c] sm:$0xff]
    %v1329 = vld [vmem:[#allocation2 + $0x164] sm:$0xf]
    %v1330 = vld [vmem:[#allocation2 + $0x168] sm:$0xff]
    %v1331 = vld [vmem:[#allocation2 + $0x170] sm:$0xf]
    %v1332 = vld [vmem:[#allocation2 + $0x174] sm:$0xff]
    %v1333 = vld [vmem:[#allocation2 + $0x17c] sm:$0xf]
    %v1334 = vld [vmem:[#allocation2 + $0x180] sm:$0xff]
    %v1335 = vld [vmem:[#allocation2 + $0x188] sm:$0xf]
    %v1336 = vld [vmem:[#allocation2 + $0x18c] sm:$0xff]
    %v1337 = vld [vmem:[#allocation2 + $0x194] sm:$0xf]
    %v1338 = vld [vmem:[#allocation2 + $0x198] sm:$0xff]
    %v1339 = vld [vmem:[#allocation2 + $0x1a0] sm:$0xf]
    %v1340 = vld [vmem:[#allocation2 + $0x1a4] sm:$0xff]
    %v1341 = vld [vmem:[#allocation2 + $0x1ac] sm:$0xf]
    %v1342 = vld [vmem:[#allocation2 + $0x1b0] sm:$0xff]
    %v1343 = vld [vmem:[#allocation2 + $0x1b8] sm:$0xf]
    %v1344 = vld [vmem:[#allocation2 + $0x1bc] sm:$0xff]
    %v1345 = vld [vmem:[#allocation2 + $0x1c4] sm:$0xf]
    %v1346 = vld [vmem:[#allocation2 + $0x1c8] sm:$0xff]
    %v1347 = vld [vmem:[#allocation2 + $0x1d0] sm:$0xf]
    %v1348 = vld [vmem:[#allocation2 + $0x1d4] sm:$0xff]
    %v1349 = vld [vmem:[#allocation2 + $0x1dc] sm:$0xf]
    %v1350 = vld [vmem:[#allocation2 + $0x1e0] sm:$0xff]
    %v1351 = vld [vmem:[#allocation2 + $0x1e8] sm:$0xf]
    %v1352 = vld [vmem:[#allocation2 + $0x1ec] sm:$0xff]
    %v1353 = vld [vmem:[#allocation2 + $0x1f4] sm:$0xf]
    %v1354 = vld [vmem:[#allocation2 + $0x1f8] sm:$0xff]
    %v1355 = vld [vmem:[#allocation2 + $0x200] sm:$0xf]
    %v1356 = vld [vmem:[#allocation2 + $0x204] sm:$0xff]
    %v1357 = vld [vmem:[#allocation2 + $0x20c] sm:$0xf]
    %v1358 = vld [vmem:[#allocation2 + $0x210] sm:$0xff]
    %v1359 = vld [vmem:[#allocation2 + $0x218] sm:$0xf]
    %v1360 = vld [vmem:[#allocation2 + $0x21c] sm:$0xff]
    %v1361 = vld [vmem:[#allocation2 + $0x224] sm:$0xf]
    %v1362 = vld [vmem:[#allocation2 + $0x228] sm:$0xff]
    %v1363 = vld [vmem:[#allocation2 + $0x230] sm:$0xf]
    %v1364 = vld [vmem:[#allocation2 + $0x234] sm:$0xff]
    %v1365 = vld [vmem:[#allocation2 + $0x23c] sm:$0xf]
    %v1366 = vld [vmem:[#allocation2 + $0x240] sm:$0xff]
    %v1367 = vld [vmem:[#allocation2 + $0x248] sm:$0xf]
    %v1368 = vld [vmem:[#allocation2 + $0x24c] sm:$0xff]
    %v1369 = vld [vmem:[#allocation2 + $0x254] sm:$0xf]
    %v1370 = vld [vmem:[#allocation2 + $0x258] sm:$0xff]
    %v1371 = vld [vmem:[#allocation2 + $0x260] sm:$0xf]
    %v1372 = vld [vmem:[#allocation2 + $0x264] sm:$0xff]
    %v1373 = vld [vmem:[#allocation2 + $0x26c] sm:$0xf]
    %v1374 = vld [vmem:[#allocation2 + $0x270] sm:$0xff]
    %v1375 = vld [vmem:[#allocation2 + $0x278] sm:$0xf]
    %v1376 = vld [vmem:[#allocation2 + $0x27c] sm:$0xff]
    %v1377 = vld [vmem:[#allocation2 + $0x284] sm:$0xf]
    %v1378 = vld [vmem:[#allocation2 + $0x288] sm:$0xff]
    %v1379 = vld [vmem:[#allocation2 + $0x290] sm:$0xf]
    %v1380 = vld [vmem:[#allocation2 + $0x294] sm:$0xff]
    %v1381 = vld [vmem:[#allocation2 + $0x29c] sm:$0xf]
    %v1382 = vld [vmem:[#allocation2 + $0x2a0] sm:$0xff]
    %v1383 = vld [vmem:[#allocation2 + $0x2a8] sm:$0xf]
    %v1384 = vld [vmem:[#allocation2 + $0x2ac] sm:$0xff]
    %v1385 = vld [vmem:[#allocation2 + $0x2b4] sm:$0xf]
    %v1386 = vld [vmem:[#allocation2 + $0x2b8] sm:$0xff]
    %v1387 = vld [vmem:[#allocation2 + $0x2c0] sm:$0xf]
    %v1388 = vld [vmem:[#allocation2 + $0x2c4] sm:$0xff]
    %v1389 = vld [vmem:[#allocation2 + $0x2cc] sm:$0xf]
    %v1390 = vld [vmem:[#allocation2 + $0x2d0] sm:$0xff]
    %v1391 = vld [vmem:[#allocation2 + $0x2d8] sm:$0xf]
    %v1392 = vld [vmem:[#allocation2 + $0x2dc] sm:$0xff]
    %v1393 = vld [vmem:[#allocation2 + $0x2e4] sm:$0xf]
    %v1394 = vld [vmem:[#allocation2 + $0x2e8] sm:$0xff]
    %v1395 = vld [vmem:[#allocation2 + $0x2f0] sm:$0xf]
    %v1396 = vld [vmem:[#allocation2 + $0x2f4] sm:$0xff]
    %v1397 = vld [vmem:[#allocation2 + $0x2fc] sm:$0xf]
    %v1398 = vld [vmem:[#allocation2 + $0x300] sm:$0xff]
    %v1399 = vld [vmem:[#allocation2 + $0x308] sm:$0xf]
    %v1400 = vld [vmem:[#allocation2 + $0x30c] sm:$0xff]
    %v1401 = vld [vmem:[#allocation2 + $0x314] sm:$0xf]
    %v1402 = vld [vmem:[#allocation2 + $0x318] sm:$0xff]
    %v1403 = vld [vmem:[#allocation2 + $0x320] sm:$0xf]
    %v1404 = vld [vmem:[#allocation2 + $0x324] sm:$0xff]
    %v1405 = vld [vmem:[#allocation2 + $0x32c] sm:$0xf]
    %v1406 = vld [vmem:[#allocation2 + $0x330] sm:$0xff]
    %v1407 = vld [vmem:[#allocation2 + $0x338] sm:$0xf]
    %v1408 = vld [vmem:[#allocation2 + $0x33c] sm:$0xff]
    %v1409 = vld [vmem:[#allocation2 + $0x344] sm:$0xf]
    %v1410 = vld [vmem:[#allocation2 + $0x348] sm:$0xff]
    %v1411 = vld [vmem:[#allocation2 + $0x350] sm:$0xf]
    %v1412 = vld [vmem:[#allocation2 + $0x354] sm:$0xff]
    %v1413 = vld [vmem:[#allocation2 + $0x35c] sm:$0xf]
    %v1414 = vld [vmem:[#allocation2 + $0x360] sm:$0xff]
    %v1415 = vld [vmem:[#allocation2 + $0x368] sm:$0xf]
    %v1416 = vld [vmem:[#allocation2 + $0x36c] sm:$0xff]
    %v1417 = vld [vmem:[#allocation2 + $0x374] sm:$0xf]
    %v1418 = vld [vmem:[#allocation2 + $0x378] sm:$0xff]
    %v1419 = vld [vmem:[#allocation2 + $0x380] sm:$0xf]
    %v1420 = vld [vmem:[#allocation2 + $0x384] sm:$0xff]
    %v1421 = vld [vmem:[#allocation2 + $0x38c] sm:$0xf]
    %v1422 = vld [vmem:[#allocation2 + $0x390] sm:$0xff]
    %v1423 = vld [vmem:[#allocation2 + $0x398] sm:$0xf]
    %v1424 = vld [vmem:[#allocation2 + $0x39c] sm:$0xff]
    %v1425 = vld [vmem:[#allocation2 + $0x3a4] sm:$0xf]
    %v1426 = vld [vmem:[#allocation2 + $0x3a8] sm:$0xff]
    %v1427 = vld [vmem:[#allocation2 + $0x3b0] sm:$0xf]
    %v1428 = vld [vmem:[#allocation2 + $0x3b4] sm:$0xff]
    %v1429 = vld [vmem:[#allocation2 + $0x3bc] sm:$0xf]
    %v1430 = vld [vmem:[%s4] sm:$0x7]
    %v1432 = vlaneseq
    %v1433 = vshrl.u32 %v1432, 7
    %v1434 = vsub.s32 0, %v1433
    %v1435 = vrot.slane %v1430, %v1434
    %v1436 = vlaneseq
    %v1437 = vshrl.u32 %v1436, 7
    %v1438 = vsub.s32 1, %v1437
    %v1439 = vrot.slane %v1430, %v1438
    %v1440 = vlaneseq
    %v1441 = vshrl.u32 %v1440, 7
    %v1442 = vsub.s32 2, %v1441
    %v1443 = vrot.slane %v1430, %v1442
    %v1607 = vunpack.c.l.b16 %v1270
    %v1608 = vunpack.c.h.b16 %v1270
    %v1609 = vunpack.c.l.b16 %v1271
    %v1610 = vunpack.c.l.b16 %v1272
    %v1611 = vunpack.c.h.b16 %v1272
    %v1612 = vunpack.c.l.b16 %v1273
    %v1613 = vunpack.c.l.b16 %v1274
    %v1614 = vunpack.c.h.b16 %v1274
    %v1615 = vunpack.c.l.b16 %v1275
    %v1616 = vunpack.c.l.b16 %v1276
    %v1617 = vunpack.c.h.b16 %v1276
    %v1618 = vunpack.c.l.b16 %v1277
    %v1619 = vunpack.c.l.b16 %v1278
    %v1620 = vunpack.c.h.b16 %v1278
    %v1621 = vunpack.c.l.b16 %v1279
    %v1622 = vunpack.c.l.b16 %v1280
    %v1623 = vunpack.c.h.b16 %v1280
    %v1624 = vunpack.c.l.b16 %v1281
    %v1625 = vunpack.c.l.b16 %v1282
    %v1626 = vunpack.c.h.b16 %v1282
    %v1627 = vunpack.c.l.b16 %v1283
    %v1628 = vunpack.c.l.b16 %v1284
    %v1629 = vunpack.c.h.b16 %v1284
    %v1630 = vunpack.c.l.b16 %v1285
    %v1631 = vunpack.c.l.b16 %v1286
    %v1632 = vunpack.c.h.b16 %v1286
    %v1633 = vunpack.c.l.b16 %v1287
    %v1634 = vunpack.c.l.b16 %v1288
    %v1635 = vunpack.c.h.b16 %v1288
    %v1636 = vunpack.c.l.b16 %v1289
    %v1637 = vunpack.c.l.b16 %v1290
    %v1638 = vunpack.c.h.b16 %v1290
    %v1639 = vunpack.c.l.b16 %v1291
    %v1640 = vunpack.c.l.b16 %v1292
    %v1641 = vunpack.c.h.b16 %v1292
    %v1642 = vunpack.c.l.b16 %v1293
    %v1643 = vunpack.c.l.b16 %v1294
    %v1644 = vunpack.c.h.b16 %v1294
    %v1645 = vunpack.c.l.b16 %v1295
    %v1646 = vunpack.c.l.b16 %v1296
    %v1647 = vunpack.c.h.b16 %v1296
    %v1648 = vunpack.c.l.b16 %v1297
    %v1649 = vunpack.c.l.b16 %v1298
    %v1650 = vunpack.c.h.b16 %v1298
    %v1651 = vunpack.c.l.b16 %v1299
    %v1652 = vunpack.c.l.b16 %v1300
    %v1653 = vunpack.c.h.b16 %v1300
    %v1654 = vunpack.c.l.b16 %v1301
    %v1655 = vunpack.c.l.b16 %v1302
    %v1656 = vunpack.c.h.b16 %v1302
    %v1657 = vunpack.c.l.b16 %v1303
    %v1658 = vunpack.c.l.b16 %v1304
    %v1659 = vunpack.c.h.b16 %v1304
    %v1660 = vunpack.c.l.b16 %v1305
    %v1661 = vunpack.c.l.b16 %v1306
    %v1662 = vunpack.c.h.b16 %v1306
    %v1663 = vunpack.c.l.b16 %v1307
    %v1664 = vunpack.c.l.b16 %v1308
    %v1665 = vunpack.c.h.b16 %v1308
    %v1666 = vunpack.c.l.b16 %v1309
    %v1667 = vunpack.c.l.b16 %v1310
    %v1668 = vunpack.c.h.b16 %v1310
    %v1669 = vunpack.c.l.b16 %v1311
    %v1670 = vunpack.c.l.b16 %v1312
    %v1671 = vunpack.c.h.b16 %v1312
    %v1672 = vunpack.c.l.b16 %v1313
    %v1673 = vunpack.c.l.b16 %v1314
    %v1674 = vunpack.c.h.b16 %v1314
    %v1675 = vunpack.c.l.b16 %v1315
    %v1676 = vunpack.c.l.b16 %v1316
    %v1677 = vunpack.c.h.b16 %v1316
    %v1678 = vunpack.c.l.b16 %v1317
    %v1679 = vunpack.c.l.b16 %v1318
    %v1680 = vunpack.c.h.b16 %v1318
    %v1681 = vunpack.c.l.b16 %v1319
    %v1682 = vunpack.c.l.b16 %v1320
    %v1683 = vunpack.c.h.b16 %v1320
    %v1684 = vunpack.c.l.b16 %v1321
    %v1685 = vunpack.c.l.b16 %v1322
    %v1686 = vunpack.c.h.b16 %v1322
    %v1687 = vunpack.c.l.b16 %v1323
    %v1688 = vunpack.c.l.b16 %v1324
    %v1689 = vunpack.c.h.b16 %v1324
    %v1690 = vunpack.c.l.b16 %v1325
    %v1691 = vunpack.c.l.b16 %v1326
    %v1692 = vunpack.c.h.b16 %v1326
    %v1693 = vunpack.c.l.b16 %v1327
    %v1694 = vunpack.c.l.b16 %v1328
    %v1695 = vunpack.c.h.b16 %v1328
    %v1696 = vunpack.c.l.b16 %v1329
    %v1697 = vunpack.c.l.b16 %v1330
    %v1698 = vunpack.c.h.b16 %v1330
    %v1699 = vunpack.c.l.b16 %v1331
    %v1700 = vunpack.c.l.b16 %v1332
    %v1701 = vunpack.c.h.b16 %v1332
    %v1702 = vunpack.c.l.b16 %v1333
    %v1703 = vunpack.c.l.b16 %v1334
    %v1704 = vunpack.c.h.b16 %v1334
    %v1705 = vunpack.c.l.b16 %v1335
    %v1706 = vunpack.c.l.b16 %v1336
    %v1707 = vunpack.c.h.b16 %v1336
    %v1708 = vunpack.c.l.b16 %v1337
    %v1709 = vunpack.c.l.b16 %v1338
    %v1710 = vunpack.c.h.b16 %v1338
    %v1711 = vunpack.c.l.b16 %v1339
    %v1712 = vunpack.c.l.b16 %v1340
    %v1713 = vunpack.c.h.b16 %v1340
    %v1714 = vunpack.c.l.b16 %v1341
    %v1715 = vunpack.c.l.b16 %v1342
    %v1716 = vunpack.c.h.b16 %v1342
    %v1717 = vunpack.c.l.b16 %v1343
    %v1718 = vunpack.c.l.b16 %v1344
    %v1719 = vunpack.c.h.b16 %v1344
    %v1720 = vunpack.c.l.b16 %v1345
    %v1721 = vunpack.c.l.b16 %v1346
    %v1722 = vunpack.c.h.b16 %v1346
    %v1723 = vunpack.c.l.b16 %v1347
    %v1724 = vunpack.c.l.b16 %v1348
    %v1725 = vunpack.c.h.b16 %v1348
    %v1726 = vunpack.c.l.b16 %v1349
    %v1727 = vunpack.c.l.b16 %v1350
    %v1728 = vunpack.c.h.b16 %v1350
    %v1729 = vunpack.c.l.b16 %v1351
    %v1730 = vunpack.c.l.b16 %v1352
    %v1731 = vunpack.c.h.b16 %v1352
    %v1732 = vunpack.c.l.b16 %v1353
    %v1733 = vunpack.c.l.b16 %v1354
    %v1734 = vunpack.c.h.b16 %v1354
    %v1735 = vunpack.c.l.b16 %v1355
    %v1736 = vunpack.c.l.b16 %v1356
    %v1737 = vunpack.c.h.b16 %v1356
    %v1738 = vunpack.c.l.b16 %v1357
    %v1739 = vunpack.c.l.b16 %v1358
    %v1740 = vunpack.c.h.b16 %v1358
    %v1741 = vunpack.c.l.b16 %v1359
    %v1742 = vunpack.c.l.b16 %v1360
    %v1743 = vunpack.c.h.b16 %v1360
    %v1744 = vunpack.c.l.b16 %v1361
    %v1745 = vunpack.c.l.b16 %v1362
    %v1746 = vunpack.c.h.b16 %v1362
    %v1747 = vunpack.c.l.b16 %v1363
    %v1748 = vunpack.c.l.b16 %v1364
    %v1749 = vunpack.c.h.b16 %v1364
    %v1750 = vunpack.c.l.b16 %v1365
    %v1751 = vunpack.c.l.b16 %v1366
    %v1752 = vunpack.c.h.b16 %v1366
    %v1753 = vunpack.c.l.b16 %v1367
    %v1754 = vunpack.c.l.b16 %v1368
    %v1755 = vunpack.c.h.b16 %v1368
    %v1756 = vunpack.c.l.b16 %v1369
    %v1757 = vunpack.c.l.b16 %v1370
    %v1758 = vunpack.c.h.b16 %v1370
    %v1759 = vunpack.c.l.b16 %v1371
    %v1760 = vunpack.c.l.b16 %v1372
    %v1761 = vunpack.c.h.b16 %v1372
    %v1762 = vunpack.c.l.b16 %v1373
    %v1763 = vunpack.c.l.b16 %v1374
    %v1764 = vunpack.c.h.b16 %v1374
    %v1765 = vunpack.c.l.b16 %v1375
    %v1766 = vunpack.c.l.b16 %v1376
    %v1767 = vunpack.c.h.b16 %v1376
    %v1768 = vunpack.c.l.b16 %v1377
    %v1769 = vunpack.c.l.b16 %v1378
    %v1770 = vunpack.c.h.b16 %v1378
    %v1771 = vunpack.c.l.b16 %v1379
    %v1772 = vunpack.c.l.b16 %v1380
    %v1773 = vunpack.c.h.b16 %v1380
    %v1774 = vunpack.c.l.b16 %v1381
    %v1775 = vunpack.c.l.b16 %v1382
    %v1776 = vunpack.c.h.b16 %v1382
    %v1777 = vunpack.c.l.b16 %v1383
    %v1778 = vunpack.c.l.b16 %v1384
    %v1779 = vunpack.c.h.b16 %v1384
    %v1780 = vunpack.c.l.b16 %v1385
    %v1781 = vunpack.c.l.b16 %v1386
    %v1782 = vunpack.c.h.b16 %v1386
    %v1783 = vunpack.c.l.b16 %v1387
    %v1784 = vunpack.c.l.b16 %v1388
    %v1785 = vunpack.c.h.b16 %v1388
    %v1786 = vunpack.c.l.b16 %v1389
    %v1787 = vunpack.c.l.b16 %v1390
    %v1788 = vunpack.c.h.b16 %v1390
    %v1789 = vunpack.c.l.b16 %v1391
    %v1790 = vunpack.c.l.b16 %v1392
    %v1791 = vunpack.c.h.b16 %v1392
    %v1792 = vunpack.c.l.b16 %v1393
    %v1793 = vunpack.c.l.b16 %v1394
    %v1794 = vunpack.c.h.b16 %v1394
    %v1795 = vunpack.c.l.b16 %v1395
    %v1796 = vunpack.c.l.b16 %v1396
    %v1797 = vunpack.c.h.b16 %v1396
    %v1798 = vunpack.c.l.b16 %v1397
    %v1799 = vunpack.c.l.b16 %v1398
    %v1800 = vunpack.c.h.b16 %v1398
    %v1801 = vunpack.c.l.b16 %v1399
    %v1802 = vunpack.c.l.b16 %v1400
    %v1803 = vunpack.c.h.b16 %v1400
    %v1804 = vunpack.c.l.b16 %v1401
    %v1805 = vunpack.c.l.b16 %v1402
    %v1806 = vunpack.c.h.b16 %v1402
    %v1807 = vunpack.c.l.b16 %v1403
    %v1808 = vunpack.c.l.b16 %v1404
    %v1809 = vunpack.c.h.b16 %v1404
    %v1810 = vunpack.c.l.b16 %v1405
    %v1811 = vunpack.c.l.b16 %v1406
    %v1812 = vunpack.c.h.b16 %v1406
    %v1813 = vunpack.c.l.b16 %v1407
    %v1814 = vunpack.c.l.b16 %v1408
    %v1815 = vunpack.c.h.b16 %v1408
    %v1816 = vunpack.c.l.b16 %v1409
    %v1817 = vunpack.c.l.b16 %v1410
    %v1818 = vunpack.c.h.b16 %v1410
    %v1819 = vunpack.c.l.b16 %v1411
    %v1820 = vunpack.c.l.b16 %v1412
    %v1821 = vunpack.c.h.b16 %v1412
    %v1822 = vunpack.c.l.b16 %v1413
    %v1823 = vunpack.c.l.b16 %v1414
    %v1824 = vunpack.c.h.b16 %v1414
    %v1825 = vunpack.c.l.b16 %v1415
    %v1826 = vunpack.c.l.b16 %v1416
    %v1827 = vunpack.c.h.b16 %v1416
    %v1828 = vunpack.c.l.b16 %v1417
    %v1829 = vunpack.c.l.b16 %v1418
    %v1830 = vunpack.c.h.b16 %v1418
    %v1831 = vunpack.c.l.b16 %v1419
    %v1832 = vunpack.c.l.b16 %v1420
    %v1833 = vunpack.c.h.b16 %v1420
    %v1834 = vunpack.c.l.b16 %v1421
    %v1835 = vunpack.c.l.b16 %v1422
    %v1836 = vunpack.c.h.b16 %v1422
    %v1837 = vunpack.c.l.b16 %v1423
    %v1838 = vunpack.c.l.b16 %v1424
    %v1839 = vunpack.c.h.b16 %v1424
    %v1840 = vunpack.c.l.b16 %v1425
    %v1841 = vunpack.c.l.b16 %v1426
    %v1842 = vunpack.c.h.b16 %v1426
    %v1843 = vunpack.c.l.b16 %v1427
    %v1844 = vunpack.c.l.b16 %v1428
    %v1845 = vunpack.c.h.b16 %v1428
    %v1846 = vunpack.c.l.b16 %v1429
    %v1847 = vpack.c.b16 %v1610, %v1607
    %v1848 = vpack.c.b16 %v1611, %v1608
    %v1849 = vpack.c.b16 %v1612, %v1609
    %v1850 = vpack.c.b16 %v1616, %v1613
    %v1851 = vpack.c.b16 %v1617, %v1614
    %v1852 = vpack.c.b16 %v1618, %v1615
    %v1853 = vpack.c.b16 %v1622, %v1619
    %v1854 = vpack.c.b16 %v1623, %v1620
    %v1855 = vpack.c.b16 %v1624, %v1621
    %v1856 = vpack.c.b16 %v1628, %v1625
    %v1857 = vpack.c.b16 %v1629, %v1626
    %v1858 = vpack.c.b16 %v1630, %v1627
    %v1859 = vpack.c.b16 %v1634, %v1631
    %v1860 = vpack.c.b16 %v1635, %v1632
    %v1861 = vpack.c.b16 %v1636, %v1633
    %v1862 = vpack.c.b16 %v1640, %v1637
    %v1863 = vpack.c.b16 %v1641, %v1638
    %v1864 = vpack.c.b16 %v1642, %v1639
    %v1865 = vpack.c.b16 %v1646, %v1643
    %v1866 = vpack.c.b16 %v1647, %v1644
    %v1867 = vpack.c.b16 %v1648, %v1645
    %v1868 = vpack.c.b16 %v1652, %v1649
    %v1869 = vpack.c.b16 %v1653, %v1650
    %v1870 = vpack.c.b16 %v1654, %v1651
    %v1871 = vpack.c.b16 %v1658, %v1655
    %v1872 = vpack.c.b16 %v1659, %v1656
    %v1873 = vpack.c.b16 %v1660, %v1657
    %v1874 = vpack.c.b16 %v1664, %v1661
    %v1875 = vpack.c.b16 %v1665, %v1662
    %v1876 = vpack.c.b16 %v1666, %v1663
    %v1877 = vpack.c.b16 %v1670, %v1667
    %v1878 = vpack.c.b16 %v1671, %v1668
    %v1879 = vpack.c.b16 %v1672, %v1669
    %v1880 = vpack.c.b16 %v1676, %v1673
    %v1881 = vpack.c.b16 %v1677, %v1674
    %v1882 = vpack.c.b16 %v1678, %v1675
    %v1883 = vpack.c.b16 %v1682, %v1679
    %v1884 = vpack.c.b16 %v1683, %v1680
    %v1885 = vpack.c.b16 %v1684, %v1681
    %v1886 = vpack.c.b16 %v1688, %v1685
    %v1887 = vpack.c.b16 %v1689, %v1686
    %v1888 = vpack.c.b16 %v1690, %v1687
    %v1889 = vpack.c.b16 %v1694, %v1691
    %v1890 = vpack.c.b16 %v1695, %v1692
    %v1891 = vpack.c.b16 %v1696, %v1693
    %v1892 = vpack.c.b16 %v1700, %v1697
    %v1893 = vpack.c.b16 %v1701, %v1698
    %v1894 = vpack.c.b16 %v1702, %v1699
    %v1895 = vpack.c.b16 %v1706, %v1703
    %v1896 = vpack.c.b16 %v1707, %v1704
    %v1897 = vpack.c.b16 %v1708, %v1705
    %v1898 = vpack.c.b16 %v1712, %v1709
    %v1899 = vpack.c.b16 %v1713, %v1710
    %v1900 = vpack.c.b16 %v1714, %v1711
    %v1901 = vpack.c.b16 %v1718, %v1715
    %v1902 = vpack.c.b16 %v1719, %v1716
    %v1903 = vpack.c.b16 %v1720, %v1717
    %v1904 = vpack.c.b16 %v1724, %v1721
    %v1905 = vpack.c.b16 %v1725, %v1722
    %v1906 = vpack.c.b16 %v1726, %v1723
    %v1907 = vpack.c.b16 %v1730, %v1727
    %v1908 = vpack.c.b16 %v1731, %v1728
    %v1909 = vpack.c.b16 %v1732, %v1729
    %v1910 = vpack.c.b16 %v1736, %v1733
    %v1911 = vpack.c.b16 %v1737, %v1734
    %v1912 = vpack.c.b16 %v1738, %v1735
    %v1913 = vpack.c.b16 %v1742, %v1739
    %v1914 = vpack.c.b16 %v1743, %v1740
    %v1915 = vpack.c.b16 %v1744, %v1741
    %v1916 = vpack.c.b16 %v1748, %v1745
    %v1917 = vpack.c.b16 %v1749, %v1746
    %v1918 = vpack.c.b16 %v1750, %v1747
    %v1919 = vpack.c.b16 %v1754, %v1751
    %v1920 = vpack.c.b16 %v1755, %v1752
    %v1921 = vpack.c.b16 %v1756, %v1753
    %v1922 = vpack.c.b16 %v1760, %v1757
    %v1923 = vpack.c.b16 %v1761, %v1758
    %v1924 = vpack.c.b16 %v1762, %v1759
    %v1925 = vpack.c.b16 %v1766, %v1763
    %v1926 = vpack.c.b16 %v1767, %v1764
    %v1927 = vpack.c.b16 %v1768, %v1765
    %v1928 = vpack.c.b16 %v1772, %v1769
    %v1929 = vpack.c.b16 %v1773, %v1770
    %v1930 = vpack.c.b16 %v1774, %v1771
    %v1931 = vpack.c.b16 %v1778, %v1775
    %v1932 = vpack.c.b16 %v1779, %v1776
    %v1933 = vpack.c.b16 %v1780, %v1777
    %v1934 = vpack.c.b16 %v1784, %v1781
    %v1935 = vpack.c.b16 %v1785, %v1782
    %v1936 = vpack.c.b16 %v1786, %v1783
    %v1937 = vpack.c.b16 %v1790, %v1787
    %v1938 = vpack.c.b16 %v1791, %v1788
    %v1939 = vpack.c.b16 %v1792, %v1789
    %v1940 = vpack.c.b16 %v1796, %v1793
    %v1941 = vpack.c.b16 %v1797, %v1794
    %v1942 = vpack.c.b16 %v1798, %v1795
    %v1943 = vpack.c.b16 %v1802, %v1799
    %v1944 = vpack.c.b16 %v1803, %v1800
    %v1945 = vpack.c.b16 %v1804, %v1801
    %v1946 = vpack.c.b16 %v1808, %v1805
    %v1947 = vpack.c.b16 %v1809, %v1806
    %v1948 = vpack.c.b16 %v1810, %v1807
    %v1949 = vpack.c.b16 %v1814, %v1811
    %v1950 = vpack.c.b16 %v1815, %v1812
    %v1951 = vpack.c.b16 %v1816, %v1813
    %v1952 = vpack.c.b16 %v1820, %v1817
    %v1953 = vpack.c.b16 %v1821, %v1818
    %v1954 = vpack.c.b16 %v1822, %v1819
    %v1955 = vpack.c.b16 %v1826, %v1823
    %v1956 = vpack.c.b16 %v1827, %v1824
    %v1957 = vpack.c.b16 %v1828, %v1825
    %v1958 = vpack.c.b16 %v1832, %v1829
    %v1959 = vpack.c.b16 %v1833, %v1830
    %v1960 = vpack.c.b16 %v1834, %v1831
    %v1961 = vpack.c.b16 %v1838, %v1835
    %v1962 = vpack.c.b16 %v1839, %v1836
    %v1963 = vpack.c.b16 %v1840, %v1837
    %v1964 = vpack.c.b16 %v1844, %v1841
    %v1965 = vpack.c.b16 %v1845, %v1842
    %v1966 = vpack.c.b16 %v1846, %v1843
    %2087 = vmatprep.subr.bf16.mxu0 %v1848
    %2088 = vmatpush1.bf16.msra.mxu0 %v1847
    %2089 = vmatprep.subr.bf16.mxu0 %v1851
    %2090 = vmatpush1.bf16.msra.mxu0 %v1850
    %2091 = vmatprep.subr.bf16.mxu0 %v1854
    %2092 = vmatpush1.bf16.msra.mxu0 %v1853
    %2093 = vmatprep.subr.bf16.mxu0 %v1857
    %2094 = vmatpush1.bf16.msra.mxu0 %v1856
    %2095 = vmatprep.subr.bf16.mxu0 %v1860
    %2096 = vmatpush1.bf16.msra.mxu0 %v1859
    %2097 = vmatprep.subr.bf16.mxu0 %v1863
    %2098 = vmatpush1.bf16.msra.mxu0 %v1862
    %2099 = vmatprep.subr.bf16.mxu0 %v1866
    %2100 = vmatpush1.bf16.msra.mxu0 %v1865
    %2101 = vmatprep.subr.bf16.mxu0 %v1869
    %2102 = vmatpush1.bf16.msra.mxu0 %v1868
    %2103 = vmatprep.subr.bf16.mxu0 %v1872
    %2104 = vmatpush1.bf16.msra.mxu0 %v1871
    %2105 = vmatprep.subr.bf16.mxu0 %v1875
    %2106 = vmatpush1.bf16.msra.mxu0 %v1874
    %2107 = vmatprep.subr.bf16.mxu0 %v1878
    %2108 = vmatpush1.bf16.msra.mxu0 %v1877
    %2109 = vmatprep.subr.bf16.mxu0 %v1881
    %2110 = vmatpush1.bf16.msra.mxu0 %v1880
    %2111 = vmatprep.subr.bf16.mxu0 %v1884
    %2112 = vmatpush1.bf16.msra.mxu0 %v1883
    %2113 = vmatprep.subr.bf16.mxu0 %v1887
    %2114 = vmatpush1.bf16.msra.mxu0 %v1886
    %2115 = vmatprep.subr.bf16.mxu0 %v1890
    %2116 = vmatpush1.bf16.msra.mxu0 %v1889
    %2117 = vmatprep.subr.bf16.mxu0 %v1893
    %2118 = vmatpush1.bf16.msra.mxu0 %v1892
    %2119 = vmatprep.mubr.bf16.mxu0 %v1231
    %2120 = vmatmul.mubr.bf16.gmra.mrb[0].mxu0 %v1230
    %v2121 = vpop.f32.mrb[0].mxu0
    %v2122 = vadd.f32 %v1435, %v2121
    %v2123 = vpop.f32.mrb[0].mxu0
    %v2124 = vadd.f32 %v1439, %v2123
    %v2125 = vpop.f32.mrb[0].mxu0
    %v2126 = vadd.f32 %v1435, %v2125
    %v2127 = vpop.f32.mrb[0].mxu0
    %v2128 = vadd.f32 %v1439, %v2127
    %2129 = vmatprep.mubr.bf16.mxu0 %v1236
    %2130 = vmatmul.mubr.bf16.gmra.mrb[0].mxu0 %v1235
    %v2131 = vpop.f32.mrb[0].mxu0
    %v2132 = vadd.f32 %v1435, %v2131
    %v2133 = vpop.f32.mrb[0].mxu0
    %v2134 = vadd.f32 %v1439, %v2133
    %v2135 = vpop.f32.mrb[0].mxu0
    %v2136 = vadd.f32 %v1435, %v2135
    %v2137 = vpop.f32.mrb[0].mxu0
    %v2138 = vadd.f32 %v1439, %v2137
    %2139 = vmatprep.mubr.bf16.mxu0 %v1241
    %2140 = vmatmul.mubr.bf16.gmra.mrb[0].mxu0 %v1240
    %v2141 = vpop.f32.mrb[0].mxu0
    %v2142 = vadd.f32 %v1435, %v2141
    %v2143 = vpop.f32.mrb[0].mxu0
    %v2144 = vadd.f32 %v1439, %v2143
    %v2145 = vpop.f32.mrb[0].mxu0
    %v2146 = vadd.f32 %v1435, %v2145
    %v2147 = vpop.f32.mrb[0].mxu0
    %v2148 = vadd.f32 %v1439, %v2147
    %2149 = vmatprep.mubr.bf16.mxu0 %v1246
    %2150 = vmatmul.mubr.bf16.gmra.mrb[0].mxu0 %v1245
    %v2151 = vpop.f32.mrb[0].mxu0
    %v2152 = vadd.f32 %v1435, %v2151
    %v2153 = vpop.f32.mrb[0].mxu0
    %v2154 = vadd.f32 %v1439, %v2153
    %v2155 = vpop.f32.mrb[0].mxu0
    %v2156 = vadd.f32 %v1435, %v2155
    %v2157 = vpop.f32.mrb[0].mxu0
    %v2158 = vadd.f32 %v1439, %v2157
    %2159 = vmatprep.mubr.bf16.mxu0 %v1251
    %2160 = vmatmul.mubr.bf16.gmra.mrb[0].mxu0 %v1250
    %v2161 = vpop.f32.mrb[0].mxu0
    %v2162 = vadd.f32 %v1435, %v2161
    %v2163 = vpop.f32.mrb[0].mxu0
    %v2164 = vadd.f32 %v1439, %v2163
    %v2165 = vpop.f32.mrb[0].mxu0
    %v2166 = vadd.f32 %v1435, %v2165
    %v2167 = vpop.f32.mrb[0].mxu0
    %v2168 = vadd.f32 %v1439, %v2167
    %2169 = vmatprep.mubr.bf16.mxu0 %v1256
    %2170 = vmatmul.mubr.bf16.gmra.mrb[0].mxu0 %v1255
    %v2171 = vpop.f32.mrb[0].mxu0
    %v2172 = vadd.f32 %v1435, %v2171
    %v2173 = vpop.f32.mrb[0].mxu0
    %v2174 = vadd.f32 %v1439, %v2173
    %v2175 = vpop.f32.mrb[0].mxu0
    %v2176 = vadd.f32 %v1435, %v2175
    %v2177 = vpop.f32.mrb[0].mxu0
    %v2178 = vadd.f32 %v1439, %v2177
    %2179 = vmatprep.mubr.bf16.mxu0 %v1261
    %2180 = vmatmul.mubr.bf16.gmra.mrb[0].mxu0 %v1260
    %v2181 = vpop.f32.mrb[0].mxu0
    %v2182 = vadd.f32 %v1435, %v2181
    %v2183 = vpop.f32.mrb[0].mxu0
    %v2184 = vadd.f32 %v1439, %v2183
    %v2185 = vpop.f32.mrb[0].mxu0
    %v2186 = vadd.f32 %v1435, %v2185
    %v2187 = vpop.f32.mrb[0].mxu0
    %v2188 = vadd.f32 %v1439, %v2187
    %2189 = vmatprep.mubr.bf16.mxu0 %v1266
    %2190 = vmatmul.mubr.bf16.gmra.mrb[0].mxu0 %v1265
    %v2191 = vpop.f32.mrb[0].mxu0
    %v2192 = vadd.f32 %v1435, %v2191
    %v2193 = vpop.f32.mrb[0].mxu0
    %v2194 = vadd.f32 %v1439, %v2193
    %v2195 = vpop.f32.mrb[0].mxu0
    %v2196 = vadd.f32 %v1435, %v2195
    %v2197 = vpop.f32.mrb[0].mxu0
    %v2198 = vadd.f32 %v1439, %v2197
    %2199 = vdwg.mxu0
    %2200 = vmatprep.subr.bf16.mxu0 %v1896
    %2201 = vmatpush1.bf16.msra.mxu0 %v1895
    %2202 = vmatprep.subr.bf16.mxu0 %v1899
    %2203 = vmatpush1.bf16.msra.mxu0 %v1898
    %2204 = vmatprep.subr.bf16.mxu0 %v1902
    %2205 = vmatpush1.bf16.msra.mxu0 %v1901
    %2206 = vmatprep.subr.bf16.mxu0 %v1905
    %2207 = vmatpush1.bf16.msra.mxu0 %v1904
    %2208 = vmatprep.subr.bf16.mxu0 %v1908
    %2209 = vmatpush1.bf16.msra.mxu0 %v1907
    %2210 = vmatprep.subr.bf16.mxu0 %v1911
    %2211 = vmatpush1.bf16.msra.mxu0 %v1910
    %2212 = vmatprep.subr.bf16.mxu0 %v1914
    %2213 = vmatpush1.bf16.msra.mxu0 %v1913
    %2214 = vmatprep.subr.bf16.mxu0 %v1917
    %2215 = vmatpush1.bf16.msra.mxu0 %v1916
    %2216 = vmatprep.subr.bf16.mxu0 %v1920
    %2217 = vmatpush1.bf16.msra.mxu0 %v1919
    %2218 = vmatprep.subr.bf16.mxu0 %v1923
    %2219 = vmatpush1.bf16.msra.mxu0 %v1922
    %2220 = vmatprep.subr.bf16.mxu0 %v1926
    %2221 = vmatpush1.bf16.msra.mxu0 %v1925
    %2222 = vmatprep.subr.bf16.mxu0 %v1929
    %2223 = vmatpush1.bf16.msra.mxu0 %v1928
    %2224 = vmatprep.subr.bf16.mxu0 %v1932
    %2225 = vmatpush1.bf16.msra.mxu0 %v1931
    %2226 = vmatprep.subr.bf16.mxu0 %v1935
    %2227 = vmatpush1.bf16.msra.mxu0 %v1934
    %2228 = vmatprep.subr.bf16.mxu0 %v1938
    %2229 = vmatpush1.bf16.msra.mxu0 %v1937
    %2230 = vmatprep.subr.bf16.mxu0 %v1941
    %2231 = vmatpush1.bf16.msra.mxu0 %v1940
    %2232 = vmatprep.mubr.bf16.mxu0 %v1233
    %2233 = vmatmul.mubr.bf16.gmra.mrb[0].mxu0 %v1232
    %v2234 = vpop.f32.mrb[0].mxu0
    %v2235 = vadd.f32 %v2122, %v2234
    %v2236 = vpop.f32.mrb[0].mxu0
    %v2237 = vadd.f32 %v2124, %v2236
    %v2238 = vpop.f32.mrb[0].mxu0
    %v2239 = vadd.f32 %v2126, %v2238
    %v2240 = vpop.f32.mrb[0].mxu0
    %v2241 = vadd.f32 %v2128, %v2240
    %2242 = vmatprep.mubr.bf16.mxu0 %v1238
    %2243 = vmatmul.mubr.bf16.gmra.mrb[0].mxu0 %v1237
    %v2244 = vpop.f32.mrb[0].mxu0
    %v2245 = vadd.f32 %v2132, %v2244
    %v2246 = vpop.f32.mrb[0].mxu0
    %v2247 = vadd.f32 %v2134, %v2246
    %v2248 = vpop.f32.mrb[0].mxu0
    %v2249 = vadd.f32 %v2136, %v2248
    %v2250 = vpop.f32.mrb[0].mxu0
    %v2251 = vadd.f32 %v2138, %v2250
    %2252 = vmatprep.mubr.bf16.mxu0 %v1243
    %2253 = vmatmul.mubr.bf16.gmra.mrb[0].mxu0 %v1242
    %v2254 = vpop.f32.mrb[0].mxu0
    %v2255 = vadd.f32 %v2142, %v2254
    %v2256 = vpop.f32.mrb[0].mxu0
    %v2257 = vadd.f32 %v2144, %v2256
    %v2258 = vpop.f32.mrb[0].mxu0
    %v2259 = vadd.f32 %v2146, %v2258
    %v2260 = vpop.f32.mrb[0].mxu0
    %v2261 = vadd.f32 %v2148, %v2260
    %2262 = vmatprep.mubr.bf16.mxu0 %v1248
    %2263 = vmatmul.mubr.bf16.gmra.mrb[0].mxu0 %v1247
    %v2264 = vpop.f32.mrb[0].mxu0
    %v2265 = vadd.f32 %v2152, %v2264
    %v2266 = vpop.f32.mrb[0].mxu0
    %v2267 = vadd.f32 %v2154, %v2266
    %v2268 = vpop.f32.mrb[0].mxu0
    %v2269 = vadd.f32 %v2156, %v2268
    %v2270 = vpop.f32.mrb[0].mxu0
    %v2271 = vadd.f32 %v2158, %v2270
    %2272 = vmatprep.mubr.bf16.mxu0 %v1253
    %2273 = vmatmul.mubr.bf16.gmra.mrb[0].mxu0 %v1252
    %v2274 = vpop.f32.mrb[0].mxu0
    %v2275 = vadd.f32 %v2162, %v2274
    %v2276 = vpop.f32.mrb[0].mxu0
    %v2277 = vadd.f32 %v2164, %v2276
    %v2278 = vpop.f32.mrb[0].mxu0
    %v2279 = vadd.f32 %v2166, %v2278
    %v2280 = vpop.f32.mrb[0].mxu0
    %v2281 = vadd.f32 %v2168, %v2280
    %2282 = vmatprep.mubr.bf16.mxu0 %v1258
    %2283 = vmatmul.mubr.bf16.gmra.mrb[0].mxu0 %v1257
    %v2284 = vpop.f32.mrb[0].mxu0
    %v2285 = vadd.f32 %v2172, %v2284
    %v2286 = vpop.f32.mrb[0].mxu0
    %v2287 = vadd.f32 %v2174, %v2286
    %v2288 = vpop.f32.mrb[0].mxu0
    %v2289 = vadd.f32 %v2176, %v2288
    %v2290 = vpop.f32.mrb[0].mxu0
    %v2291 = vadd.f32 %v2178, %v2290
    %2292 = vmatprep.mubr.bf16.mxu0 %v1263
    %2293 = vmatmul.mubr.bf16.gmra.mrb[0].mxu0 %v1262
    %v2294 = vpop.f32.mrb[0].mxu0
    %v2295 = vadd.f32 %v2182, %v2294
    %v2296 = vpop.f32.mrb[0].mxu0
    %v2297 = vadd.f32 %v2184, %v2296
    %v2298 = vpop.f32.mrb[0].mxu0
    %v2299 = vadd.f32 %v2186, %v2298
    %v2300 = vpop.f32.mrb[0].mxu0
    %v2301 = vadd.f32 %v2188, %v2300
    %2302 = vmatprep.mubr.bf16.mxu0 %v1268
    %2303 = vmatmul.mubr.bf16.gmra.mrb[0].mxu0 %v1267
    %v2304 = vpop.f32.mrb[0].mxu0
    %v2305 = vadd.f32 %v2192, %v2304
    %v2306 = vpop.f32.mrb[0].mxu0
    %v2307 = vadd.f32 %v2194, %v2306
    %v2308 = vpop.f32.mrb[0].mxu0
    %v2309 = vadd.f32 %v2196, %v2308
    %v2310 = vpop.f32.mrb[0].mxu0
    %v2311 = vadd.f32 %v2198, %v2310
    %2312 = vdwg.mxu0
    %2313 = vmatprep.subr.bf16.mxu0 %v1944
    %2314 = vmatpush1.bf16.msra.mxu0 %v1943
    %2315 = vmatprep.subr.bf16.mxu0 %v1947
    %2316 = vmatpush1.bf16.msra.mxu0 %v1946
    %2317 = vmatprep.subr.bf16.mxu0 %v1950
    %2318 = vmatpush1.bf16.msra.mxu0 %v1949
    %2319 = vmatprep.subr.bf16.mxu0 %v1953
    %2320 = vmatpush1.bf16.msra.mxu0 %v1952
    %2321 = vmatprep.subr.bf16.mxu0 %v1956
    %2322 = vmatpush1.bf16.msra.mxu0 %v1955
    %2323 = vmatprep.subr.bf16.mxu0 %v1959
    %2324 = vmatpush1.bf16.msra.mxu0 %v1958
    %2325 = vmatprep.subr.bf16.mxu0 %v1962
    %2326 = vmatpush1.bf16.msra.mxu0 %v1961
    %2327 = vmatprep.subr.bf16.mxu0 %v1965
    %2328 = vmatpush1.bf16.msra.mxu0 %v1964
    %2329 = vmatprep.subr.bf16.mxu0 0
    %2330 = vmatpush1.bf16.msra.mxu0 0
    %2331 = vmatprep.subr.bf16.mxu0 0
    %2332 = vmatpush1.bf16.msra.mxu0 0
    %2333 = vmatprep.subr.bf16.mxu0 0
    %2334 = vmatpush1.bf16.msra.mxu0 0
    %2335 = vmatprep.subr.bf16.mxu0 0
    %2336 = vmatpush1.bf16.msra.mxu0 0
    %2337 = vmatprep.subr.bf16.mxu0 0
    %2338 = vmatpush1.bf16.msra.mxu0 0
    %2339 = vmatprep.subr.bf16.mxu0 0
    %2340 = vmatpush1.bf16.msra.mxu0 0
    %2341 = vmatprep.subr.bf16.mxu0 0
    %2342 = vmatpush1.bf16.msra.mxu0 0
    %2343 = vmatprep.subr.bf16.mxu0 0
    %2344 = vmatpush1.bf16.msra.mxu0 0
    %2345 = vmatprep.mubr.bf16.mxu0 0
    %2346 = vmatmul.mubr.bf16.gmra.mrb[0].mxu0 %v1234
    %v2347 = vpop.f32.mrb[0].mxu0
    %v2348 = vadd.f32 %v2235, %v2347
    %v2349 = vpop.f32.mrb[0].mxu0
    %v2350 = vadd.f32 %v2237, %v2349
    %v2351 = vpop.f32.mrb[0].mxu0
    %v2352 = vadd.f32 %v2239, %v2351
    %v2353 = vpop.f32.mrb[0].mxu0
    %v2354 = vadd.f32 %v2241, %v2353
    %2355 = vmatprep.mubr.bf16.mxu0 0
    %2356 = vmatmul.mubr.bf16.gmra.mrb[0].mxu0 %v1239
    %v2357 = vpop.f32.mrb[0].mxu0
    %v2358 = vadd.f32 %v2245, %v2357
    %v2359 = vpop.f32.mrb[0].mxu0
    %v2360 = vadd.f32 %v2247, %v2359
    %v2361 = vpop.f32.mrb[0].mxu0
    %v2362 = vadd.f32 %v2249, %v2361
    %v2363 = vpop.f32.mrb[0].mxu0
    %v2364 = vadd.f32 %v2251, %v2363
    %2365 = vmatprep.mubr.bf16.mxu0 0
    %2366 = vmatmul.mubr.bf16.gmra.mrb[0].mxu0 %v1244
    %v2367 = vpop.f32.mrb[0].mxu0
    %v2368 = vadd.f32 %v2255, %v2367
    %v2369 = vpop.f32.mrb[0].mxu0
    %v2370 = vadd.f32 %v2257, %v2369
    %v2371 = vpop.f32.mrb[0].mxu0
    %v2372 = vadd.f32 %v2259, %v2371
    %v2373 = vpop.f32.mrb[0].mxu0
    %v2374 = vadd.f32 %v2261, %v2373
    %2375 = vmatprep.mubr.bf16.mxu0 0
    %2376 = vmatmul.mubr.bf16.gmra.mrb[0].mxu0 %v1249
    %v2377 = vpop.f32.mrb[0].mxu0
    %v2378 = vadd.f32 %v2265, %v2377
    %v2379 = vpop.f32.mrb[0].mxu0
    %v2380 = vadd.f32 %v2267, %v2379
    %v2381 = vpop.f32.mrb[0].mxu0
    %v2382 = vadd.f32 %v2269, %v2381
    %v2383 = vpop.f32.mrb[0].mxu0
    %v2384 = vadd.f32 %v2271, %v2383
    %2385 = vmatprep.mubr.bf16.mxu0 0
    %2386 = vmatmul.mubr.bf16.gmra.mrb[0].mxu0 %v1254
    %v2387 = vpop.f32.mrb[0].mxu0
    %v2388 = vadd.f32 %v2275, %v2387
    %v2389 = vpop.f32.mrb[0].mxu0
    %v2390 = vadd.f32 %v2277, %v2389
    %v2391 = vpop.f32.mrb[0].mxu0
    %v2392 = vadd.f32 %v2279, %v2391
    %v2393 = vpop.f32.mrb[0].mxu0
    %v2394 = vadd.f32 %v2281, %v2393
    %2395 = vmatprep.mubr.bf16.mxu0 0
    %2396 = vmatmul.mubr.bf16.gmra.mrb[0].mxu0 %v1259
    %v2397 = vpop.f32.mrb[0].mxu0
    %v2398 = vadd.f32 %v2285, %v2397
    %v2399 = vpop.f32.mrb[0].mxu0
    %v2400 = vadd.f32 %v2287, %v2399
    %v2401 = vpop.f32.mrb[0].mxu0
    %v2402 = vadd.f32 %v2289, %v2401
    %v2403 = vpop.f32.mrb[0].mxu0
    %v2404 = vadd.f32 %v2291, %v2403
    %2405 = vmatprep.mubr.bf16.mxu0 0
    %2406 = vmatmul.mubr.bf16.gmra.mrb[0].mxu0 %v1264
    %v2407 = vpop.f32.mrb[0].mxu0
    %v2408 = vadd.f32 %v2295, %v2407
    %v2409 = vpop.f32.mrb[0].mxu0
    %v2410 = vadd.f32 %v2297, %v2409
    %v2411 = vpop.f32.mrb[0].mxu0
    %v2412 = vadd.f32 %v2299, %v2411
    %v2413 = vpop.f32.mrb[0].mxu0
    %v2414 = vadd.f32 %v2301, %v2413
    %2415 = vmatprep.mubr.bf16.mxu0 0
    %2416 = vmatmul.mubr.bf16.gmra.mrb[0].mxu0 %v1269
    %v2417 = vpop.f32.mrb[0].mxu0
    %v2418 = vadd.f32 %v2305, %v2417
    %v2419 = vpop.f32.mrb[0].mxu0
    %v2420 = vadd.f32 %v2307, %v2419
    %v2421 = vpop.f32.mrb[0].mxu0
    %v2422 = vadd.f32 %v2309, %v2421
    %v2423 = vpop.f32.mrb[0].mxu0
    %v2424 = vadd.f32 %v2311, %v2423
    %2425 = vdwg.mxu0
    %2426 = vmatprep.subr.bf16.mxu0 0
    %2427 = vmatpush1.bf16.msra.mxu0 %v1849
    %2428 = vmatprep.subr.bf16.mxu0 0
    %2429 = vmatpush1.bf16.msra.mxu0 %v1852
    %2430 = vmatprep.subr.bf16.mxu0 0
    %2431 = vmatpush1.bf16.msra.mxu0 %v1855
    %2432 = vmatprep.subr.bf16.mxu0 0
    %2433 = vmatpush1.bf16.msra.mxu0 %v1858
    %2434 = vmatprep.subr.bf16.mxu0 0
    %2435 = vmatpush1.bf16.msra.mxu0 %v1861
    %2436 = vmatprep.subr.bf16.mxu0 0
    %2437 = vmatpush1.bf16.msra.mxu0 %v1864
    %2438 = vmatprep.subr.bf16.mxu0 0
    %2439 = vmatpush1.bf16.msra.mxu0 %v1867
    %2440 = vmatprep.subr.bf16.mxu0 0
    %2441 = vmatpush1.bf16.msra.mxu0 %v1870
    %2442 = vmatprep.subr.bf16.mxu0 0
    %2443 = vmatpush1.bf16.msra.mxu0 %v1873
    %2444 = vmatprep.subr.bf16.mxu0 0
    %2445 = vmatpush1.bf16.msra.mxu0 %v1876
    %2446 = vmatprep.subr.bf16.mxu0 0
    %2447 = vmatpush1.bf16.msra.mxu0 %v1879
    %2448 = vmatprep.subr.bf16.mxu0 0
    %2449 = vmatpush1.bf16.msra.mxu0 %v1882
    %2450 = vmatprep.subr.bf16.mxu0 0
    %2451 = vmatpush1.bf16.msra.mxu0 %v1885
    %2452 = vmatprep.subr.bf16.mxu0 0
    %2453 = vmatpush1.bf16.msra.mxu0 %v1888
    %2454 = vmatprep.subr.bf16.mxu0 0
    %2455 = vmatpush1.bf16.msra.mxu0 %v1891
    %2456 = vmatprep.subr.bf16.mxu0 0
    %2457 = vmatpush1.bf16.msra.mxu0 %v1894
    %2458 = vmatprep.mubr.bf16.mxu0 %v1231
    %2459 = vmatmul.mubr.bf16.gmra.mrb[0].mxu0 %v1230
    %v2460 = vpop.f32.mrb[0].mxu0
    %v2461 = vadd.f32 %v1443, %v2460
    %v2462 = vpop.f32.mrb[0].mxu0
    %v2463 = vpop.f32.mrb[0].mxu0
    %v2464 = vadd.f32 %v1443, %v2463
    %v2465 = vpop.f32.mrb[0].mxu0
    %2466 = vmatprep.mubr.bf16.mxu0 %v1236
    %2467 = vmatmul.mubr.bf16.gmra.mrb[0].mxu0 %v1235
    %v2468 = vpop.f32.mrb[0].mxu0
    %v2469 = vadd.f32 %v1443, %v2468
    %v2470 = vpop.f32.mrb[0].mxu0
    %v2471 = vpop.f32.mrb[0].mxu0
    %v2472 = vadd.f32 %v1443, %v2471
    %v2473 = vpop.f32.mrb[0].mxu0
    %2474 = vmatprep.mubr.bf16.mxu0 %v1241
    %2475 = vmatmul.mubr.bf16.gmra.mrb[0].mxu0 %v1240
    %v2476 = vpop.f32.mrb[0].mxu0
    %v2477 = vadd.f32 %v1443, %v2476
    %v2478 = vpop.f32.mrb[0].mxu0
    %v2479 = vpop.f32.mrb[0].mxu0
    %v2480 = vadd.f32 %v1443, %v2479
    %v2481 = vpop.f32.mrb[0].mxu0
    %2482 = vmatprep.mubr.bf16.mxu0 %v1246
    %2483 = vmatmul.mubr.bf16.gmra.mrb[0].mxu0 %v1245
    %v2484 = vpop.f32.mrb[0].mxu0
    %v2485 = vadd.f32 %v1443, %v2484
    %v2486 = vpop.f32.mrb[0].mxu0
    %v2487 = vpop.f32.mrb[0].mxu0
    %v2488 = vadd.f32 %v1443, %v2487
    %v2489 = vpop.f32.mrb[0].mxu0
    %2490 = vmatprep.mubr.bf16.mxu0 %v1251
    %2491 = vmatmul.mubr.bf16.gmra.mrb[0].mxu0 %v1250
    %v2492 = vpop.f32.mrb[0].mxu0
    %v2493 = vadd.f32 %v1443, %v2492
    %v2494 = vpop.f32.mrb[0].mxu0
    %v2495 = vpop.f32.mrb[0].mxu0
    %v2496 = vadd.f32 %v1443, %v2495
    %v2497 = vpop.f32.mrb[0].mxu0
    %2498 = vmatprep.mubr.bf16.mxu0 %v1256
    %2499 = vmatmul.mubr.bf16.gmra.mrb[0].mxu0 %v1255
    %v2500 = vpop.f32.mrb[0].mxu0
    %v2501 = vadd.f32 %v1443, %v2500
    %v2502 = vpop.f32.mrb[0].mxu0
    %v2503 = vpop.f32.mrb[0].mxu0
    %v2504 = vadd.f32 %v1443, %v2503
    %v2505 = vpop.f32.mrb[0].mxu0
    %2506 = vmatprep.mubr.bf16.mxu0 %v1261
    %2507 = vmatmul.mubr.bf16.gmra.mrb[0].mxu0 %v1260
    %v2508 = vpop.f32.mrb[0].mxu0
    %v2509 = vadd.f32 %v1443, %v2508
    %v2510 = vpop.f32.mrb[0].mxu0
    %v2511 = vpop.f32.mrb[0].mxu0
    %v2512 = vadd.f32 %v1443, %v2511
    %v2513 = vpop.f32.mrb[0].mxu0
    %2514 = vmatprep.mubr.bf16.mxu0 %v1266
    %2515 = vmatmul.mubr.bf16.gmra.mrb[0].mxu0 %v1265
    %v2516 = vpop.f32.mrb[0].mxu0
    %v2517 = vadd.f32 %v1443, %v2516
    %v2518 = vpop.f32.mrb[0].mxu0
    %v2519 = vpop.f32.mrb[0].mxu0
    %v2520 = vadd.f32 %v1443, %v2519
    %v2521 = vpop.f32.mrb[0].mxu0
    %2522 = vdwg.mxu0
    %2523 = vmatprep.subr.bf16.mxu0 0
    %2524 = vmatpush1.bf16.msra.mxu0 %v1897
    %2525 = vmatprep.subr.bf16.mxu0 0
    %2526 = vmatpush1.bf16.msra.mxu0 %v1900
    %2527 = vmatprep.subr.bf16.mxu0 0
    %2528 = vmatpush1.bf16.msra.mxu0 %v1903
    %2529 = vmatprep.subr.bf16.mxu0 0
    %2530 = vmatpush1.bf16.msra.mxu0 %v1906
    %2531 = vmatprep.subr.bf16.mxu0 0
    %2532 = vmatpush1.bf16.msra.mxu0 %v1909
    %2533 = vmatprep.subr.bf16.mxu0 0
    %2534 = vmatpush1.bf16.msra.mxu0 %v1912
    %2535 = vmatprep.subr.bf16.mxu0 0
    %2536 = vmatpush1.bf16.msra.mxu0 %v1915
    %2537 = vmatprep.subr.bf16.mxu0 0
    %2538 = vmatpush1.bf16.msra.mxu0 %v1918
    %2539 = vmatprep.subr.bf16.mxu0 0
    %2540 = vmatpush1.bf16.msra.mxu0 %v1921
    %2541 = vmatprep.subr.bf16.mxu0 0
    %2542 = vmatpush1.bf16.msra.mxu0 %v1924
    %2543 = vmatprep.subr.bf16.mxu0 0
    %2544 = vmatpush1.bf16.msra.mxu0 %v1927
    %2545 = vmatprep.subr.bf16.mxu0 0
    %2546 = vmatpush1.bf16.msra.mxu0 %v1930
    %2547 = vmatprep.subr.bf16.mxu0 0
    %2548 = vmatpush1.bf16.msra.mxu0 %v1933
    %2549 = vmatprep.subr.bf16.mxu0 0
    %2550 = vmatpush1.bf16.msra.mxu0 %v1936
    %2551 = vmatprep.subr.bf16.mxu0 0
    %2552 = vmatpush1.bf16.msra.mxu0 %v1939
    %2553 = vmatprep.subr.bf16.mxu0 0
    %2554 = vmatpush1.bf16.msra.mxu0 %v1942
    %2555 = vmatprep.mubr.bf16.mxu0 %v1233
    %2556 = vmatmul.mubr.bf16.gmra.mrb[0].mxu0 %v1232
    %v2557 = vpop.f32.mrb[0].mxu0
    %v2558 = vadd.f32 %v2461, %v2557
    %v2559 = vpop.f32.mrb[0].mxu0
    %v2560 = vpop.f32.mrb[0].mxu0
    %v2561 = vadd.f32 %v2464, %v2560
    %v2562 = vpop.f32.mrb[0].mxu0
    %2563 = vmatprep.mubr.bf16.mxu0 %v1238
    %2564 = vmatmul.mubr.bf16.gmra.mrb[0].mxu0 %v1237
    %v2565 = vpop.f32.mrb[0].mxu0
    %v2566 = vadd.f32 %v2469, %v2565
    %v2567 = vpop.f32.mrb[0].mxu0
    %v2568 = vpop.f32.mrb[0].mxu0
    %v2569 = vadd.f32 %v2472, %v2568
    %v2570 = vpop.f32.mrb[0].mxu0
    %2571 = vmatprep.mubr.bf16.mxu0 %v1243
    %2572 = vmatmul.mubr.bf16.gmra.mrb[0].mxu0 %v1242
    %v2573 = vpop.f32.mrb[0].mxu0
    %v2574 = vadd.f32 %v2477, %v2573
    %v2575 = vpop.f32.mrb[0].mxu0
    %v2576 = vpop.f32.mrb[0].mxu0
    %v2577 = vadd.f32 %v2480, %v2576
    %v2578 = vpop.f32.mrb[0].mxu0
    %2579 = vmatprep.mubr.bf16.mxu0 %v1248
    %2580 = vmatmul.mubr.bf16.gmra.mrb[0].mxu0 %v1247
    %v2581 = vpop.f32.mrb[0].mxu0
    %v2582 = vadd.f32 %v2485, %v2581
    %v2583 = vpop.f32.mrb[0].mxu0
    %v2584 = vpop.f32.mrb[0].mxu0
    %v2585 = vadd.f32 %v2488, %v2584
    %v2586 = vpop.f32.mrb[0].mxu0
    %2587 = vmatprep.mubr.bf16.mxu0 %v1253
    %2588 = vmatmul.mubr.bf16.gmra.mrb[0].mxu0 %v1252
    %v2589 = vpop.f32.mrb[0].mxu0
    %v2590 = vadd.f32 %v2493, %v2589
    %v2591 = vpop.f32.mrb[0].mxu0
    %v2592 = vpop.f32.mrb[0].mxu0
    %v2593 = vadd.f32 %v2496, %v2592
    %v2594 = vpop.f32.mrb[0].mxu0
    %2595 = vmatprep.mubr.bf16.mxu0 %v1258
    %2596 = vmatmul.mubr.bf16.gmra.mrb[0].mxu0 %v1257
    %v2597 = vpop.f32.mrb[0].mxu0
    %v2598 = vadd.f32 %v2501, %v2597
    %v2599 = vpop.f32.mrb[0].mxu0
    %v2600 = vpop.f32.mrb[0].mxu0
    %v2601 = vadd.f32 %v2504, %v2600
    %v2602 = vpop.f32.mrb[0].mxu0
    %2603 = vmatprep.mubr.bf16.mxu0 %v1263
    %2604 = vmatmul.mubr.bf16.gmra.mrb[0].mxu0 %v1262
    %v2605 = vpop.f32.mrb[0].mxu0
    %v2606 = vadd.f32 %v2509, %v2605
    %v2607 = vpop.f32.mrb[0].mxu0
    %v2608 = vpop.f32.mrb[0].mxu0
    %v2609 = vadd.f32 %v2512, %v2608
    %v2610 = vpop.f32.mrb[0].mxu0
    %2611 = vmatprep.mubr.bf16.mxu0 %v1268
    %2612 = vmatmul.mubr.bf16.gmra.mrb[0].mxu0 %v1267
    %v2613 = vpop.f32.mrb[0].mxu0
    %v2614 = vadd.f32 %v2517, %v2613
    %v2615 = vpop.f32.mrb[0].mxu0
    %v2616 = vpop.f32.mrb[0].mxu0
    %v2617 = vadd.f32 %v2520, %v2616
    %v2618 = vpop.f32.mrb[0].mxu0
    %2619 = vdwg.mxu0
    %2620 = vmatprep.subr.bf16.mxu0 0
    %2621 = vmatpush1.bf16.msra.mxu0 %v1945
    %2622 = vmatprep.subr.bf16.mxu0 0
    %2623 = vmatpush1.bf16.msra.mxu0 %v1948
    %2624 = vmatprep.subr.bf16.mxu0 0
    %2625 = vmatpush1.bf16.msra.mxu0 %v1951
    %2626 = vmatprep.subr.bf16.mxu0 0
    %2627 = vmatpush1.bf16.msra.mxu0 %v1954
    %2628 = vmatprep.subr.bf16.mxu0 0
    %2629 = vmatpush1.bf16.msra.mxu0 %v1957
    %2630 = vmatprep.subr.bf16.mxu0 0
    %2631 = vmatpush1.bf16.msra.mxu0 %v1960
    %2632 = vmatprep.subr.bf16.mxu0 0
    %2633 = vmatpush1.bf16.msra.mxu0 %v1963
    %2634 = vmatprep.subr.bf16.mxu0 0
    %2635 = vmatpush1.bf16.msra.mxu0 %v1966
    %2636 = vmatprep.subr.bf16.mxu0 0
    %2637 = vmatpush1.bf16.msra.mxu0 0
    %2638 = vmatprep.subr.bf16.mxu0 0
    %2639 = vmatpush1.bf16.msra.mxu0 0
    %2640 = vmatprep.subr.bf16.mxu0 0
    %2641 = vmatpush1.bf16.msra.mxu0 0
    %2642 = vmatprep.subr.bf16.mxu0 0
    %2643 = vmatpush1.bf16.msra.mxu0 0
    %2644 = vmatprep.subr.bf16.mxu0 0
    %2645 = vmatpush1.bf16.msra.mxu0 0
    %2646 = vmatprep.subr.bf16.mxu0 0
    %2647 = vmatpush1.bf16.msra.mxu0 0
    %2648 = vmatprep.subr.bf16.mxu0 0
    %2649 = vmatpush1.bf16.msra.mxu0 0
    %2650 = vmatprep.subr.bf16.mxu0 0
    %2651 = vmatpush1.bf16.msra.mxu0 0
    %2652 = vmatprep.mubr.bf16.mxu0 0
    %2653 = vmatmul.mubr.bf16.gmra.mrb[0].mxu0 %v1234
    %v2654 = vpop.f32.mrb[0].mxu0
    %v2655 = vadd.f32 %v2558, %v2654
    %v2656 = vpop.f32.mrb[0].mxu0
    %v2657 = vpop.f32.mrb[0].mxu0
    %v2658 = vadd.f32 %v2561, %v2657
    %v2659 = vpop.f32.mrb[0].mxu0
    %2660 = vmatprep.mubr.bf16.mxu0 0
    %2661 = vmatmul.mubr.bf16.gmra.mrb[0].mxu0 %v1239
    %v2662 = vpop.f32.mrb[0].mxu0
    %v2663 = vadd.f32 %v2566, %v2662
    %v2664 = vpop.f32.mrb[0].mxu0
    %v2665 = vpop.f32.mrb[0].mxu0
    %v2666 = vadd.f32 %v2569, %v2665
    %v2667 = vpop.f32.mrb[0].mxu0
    %2668 = vmatprep.mubr.bf16.mxu0 0
    %2669 = vmatmul.mubr.bf16.gmra.mrb[0].mxu0 %v1244
    %v2670 = vpop.f32.mrb[0].mxu0
    %v2671 = vadd.f32 %v2574, %v2670
    %v2672 = vpop.f32.mrb[0].mxu0
    %v2673 = vpop.f32.mrb[0].mxu0
    %v2674 = vadd.f32 %v2577, %v2673
    %v2675 = vpop.f32.mrb[0].mxu0
    %2676 = vmatprep.mubr.bf16.mxu0 0
    %2677 = vmatmul.mubr.bf16.gmra.mrb[0].mxu0 %v1249
    %v2678 = vpop.f32.mrb[0].mxu0
    %v2679 = vadd.f32 %v2582, %v2678
    %v2680 = vpop.f32.mrb[0].mxu0
    %v2681 = vpop.f32.mrb[0].mxu0
    %v2682 = vadd.f32 %v2585, %v2681
    %v2683 = vpop.f32.mrb[0].mxu0
    %2684 = vmatprep.mubr.bf16.mxu0 0
    %2685 = vmatmul.mubr.bf16.gmra.mrb[0].mxu0 %v1254
    %v2686 = vpop.f32.mrb[0].mxu0
    %v2687 = vadd.f32 %v2590, %v2686
    %v2688 = vpop.f32.mrb[0].mxu0
    %v2689 = vpop.f32.mrb[0].mxu0
    %v2690 = vadd.f32 %v2593, %v2689
    %v2691 = vpop.f32.mrb[0].mxu0
    %2692 = vmatprep.mubr.bf16.mxu0 0
    %2693 = vmatmul.mubr.bf16.gmra.mrb[0].mxu0 %v1259
    %v2694 = vpop.f32.mrb[0].mxu0
    %v2695 = vadd.f32 %v2598, %v2694
    %v2696 = vpop.f32.mrb[0].mxu0
    %v2697 = vpop.f32.mrb[0].mxu0
    %v2698 = vadd.f32 %v2601, %v2697
    %v2699 = vpop.f32.mrb[0].mxu0
    %2700 = vmatprep.mubr.bf16.mxu0 0
    %2701 = vmatmul.mubr.bf16.gmra.mrb[0].mxu0 %v1264
    %v2702 = vpop.f32.mrb[0].mxu0
    %v2703 = vadd.f32 %v2606, %v2702
    %v2704 = vpop.f32.mrb[0].mxu0
    %v2705 = vpop.f32.mrb[0].mxu0
    %v2706 = vadd.f32 %v2609, %v2705
    %v2707 = vpop.f32.mrb[0].mxu0
    %2708 = vmatprep.mubr.bf16.mxu0 0
    %2709 = vmatmul.mubr.bf16.gmra.mrb[0].mxu0 %v1269
    %v2710 = vpop.f32.mrb[0].mxu0
    %v2711 = vadd.f32 %v2614, %v2710
    %v2712 = vpop.f32.mrb[0].mxu0
    %v2713 = vpop.f32.mrb[0].mxu0
    %v2714 = vadd.f32 %v2617, %v2713
    %v2715 = vpop.f32.mrb[0].mxu0
    %2716 = vdwg.mxu0
    %vm2717 = vcmp.gt.f32.partialorder %v2348, 0.0
    %vm2718 = vcmp.gt.f32.partialorder %v2350, 0.0
    %vm2719 = vcmp.gt.f32.partialorder %v2655, 0.0
    %vm2720 = vcmp.gt.f32.partialorder %v2352, 0.0
    %vm2721 = vcmp.gt.f32.partialorder %v2354, 0.0
    %vm2722 = vcmp.gt.f32.partialorder %v2658, 0.0
    %vm2723 = vcmp.gt.f32.partialorder %v2358, 0.0
    %vm2724 = vcmp.gt.f32.partialorder %v2360, 0.0
    %vm2725 = vcmp.gt.f32.partialorder %v2663, 0.0
    %vm2726 = vcmp.gt.f32.partialorder %v2362, 0.0
    %vm2727 = vcmp.gt.f32.partialorder %v2364, 0.0
    %vm2728 = vcmp.gt.f32.partialorder %v2666, 0.0
    %vm2729 = vcmp.gt.f32.partialorder %v2368, 0.0
    %vm2730 = vcmp.gt.f32.partialorder %v2370, 0.0
    %vm2731 = vcmp.gt.f32.partialorder %v2671, 0.0
    %vm2732 = vcmp.gt.f32.partialorder %v2372, 0.0
    %vm2733 = vcmp.gt.f32.partialorder %v2374, 0.0
    %vm2734 = vcmp.gt.f32.partialorder %v2674, 0.0
    %vm2735 = vcmp.gt.f32.partialorder %v2378, 0.0
    %vm2736 = vcmp.gt.f32.partialorder %v2380, 0.0
    %vm2737 = vcmp.gt.f32.partialorder %v2679, 0.0
    %vm2738 = vcmp.gt.f32.partialorder %v2382, 0.0
    %vm2739 = vcmp.gt.f32.partialorder %v2384, 0.0
    %vm2740 = vcmp.gt.f32.partialorder %v2682, 0.0
    %vm2741 = vcmp.gt.f32.partialorder %v2388, 0.0
    %vm2742 = vcmp.gt.f32.partialorder %v2390, 0.0
    %vm2743 = vcmp.gt.f32.partialorder %v2687, 0.0
    %vm2744 = vcmp.gt.f32.partialorder %v2392, 0.0
    %vm2745 = vcmp.gt.f32.partialorder %v2394, 0.0
    %vm2746 = vcmp.gt.f32.partialorder %v2690, 0.0
    %vm2747 = vcmp.gt.f32.partialorder %v2398, 0.0
    %vm2748 = vcmp.gt.f32.partialorder %v2400, 0.0
    %vm2749 = vcmp.gt.f32.partialorder %v2695, 0.0
    %vm2750 = vcmp.gt.f32.partialorder %v2402, 0.0
    %vm2751 = vcmp.gt.f32.partialorder %v2404, 0.0
    %vm2752 = vcmp.gt.f32.partialorder %v2698, 0.0
    %vm2753 = vcmp.gt.f32.partialorder %v2408, 0.0
    %vm2754 = vcmp.gt.f32.partialorder %v2410, 0.0
    %vm2755 = vcmp.gt.f32.partialorder %v2703, 0.0
    %vm2756 = vcmp.gt.f32.partialorder %v2412, 0.0
    %vm2757 = vcmp.gt.f32.partialorder %v2414, 0.0
    %vm2758 = vcmp.gt.f32.partialorder %v2706, 0.0
    %vm2759 = vcmp.gt.f32.partialorder %v2418, 0.0
    %vm2760 = vcmp.gt.f32.partialorder %v2420, 0.0
    %vm2761 = vcmp.gt.f32.partialorder %v2711, 0.0
    %vm2762 = vcmp.gt.f32.partialorder %v2422, 0.0
    %vm2763 = vcmp.gt.f32.partialorder %v2424, 0.0
    %vm2764 = vcmp.gt.f32.partialorder %v2714, 0.0
    %v2765 = vmul.f32 %v2348, 0.01
    %v2766 = vmul.f32 %v2350, 0.01
    %v2767 = vmul.f32 %v2655, 0.01
    %v2768 = vmul.f32 %v2352, 0.01
    %v2769 = vmul.f32 %v2354, 0.01
    %v2770 = vmul.f32 %v2658, 0.01
    %v2771 = vmul.f32 %v2358, 0.01
    %v2772 = vmul.f32 %v2360, 0.01
    %v2773 = vmul.f32 %v2663, 0.01
    %v2774 = vmul.f32 %v2362, 0.01
    %v2775 = vmul.f32 %v2364, 0.01
    %v2776 = vmul.f32 %v2666, 0.01
    %v2777 = vmul.f32 %v2368, 0.01
    %v2778 = vmul.f32 %v2370, 0.01
    %v2779 = vmul.f32 %v2671, 0.01
    %v2780 = vmul.f32 %v2372, 0.01
    %v2781 = vmul.f32 %v2374, 0.01
    %v2782 = vmul.f32 %v2674, 0.01
    %v2783 = vmul.f32 %v2378, 0.01
    %v2784 = vmul.f32 %v2380, 0.01
    %v2785 = vmul.f32 %v2679, 0.01
    %v2786 = vmul.f32 %v2382, 0.01
    %v2787 = vmul.f32 %v2384, 0.01
    %v2788 = vmul.f32 %v2682, 0.01
    %v2789 = vmul.f32 %v2388, 0.01
    %v2790 = vmul.f32 %v2390, 0.01
    %v2791 = vmul.f32 %v2687, 0.01
    %v2792 = vmul.f32 %v2392, 0.01
    %v2793 = vmul.f32 %v2394, 0.01
    %v2794 = vmul.f32 %v2690, 0.01
    %v2795 = vmul.f32 %v2398, 0.01
    %v2796 = vmul.f32 %v2400, 0.01
    %v2797 = vmul.f32 %v2695, 0.01
    %v2798 = vmul.f32 %v2402, 0.01
    %v2799 = vmul.f32 %v2404, 0.01
    %v2800 = vmul.f32 %v2698, 0.01
    %v2801 = vmul.f32 %v2408, 0.01
    %v2802 = vmul.f32 %v2410, 0.01
    %v2803 = vmul.f32 %v2703, 0.01
    %v2804 = vmul.f32 %v2412, 0.01
    %v2805 = vmul.f32 %v2414, 0.01
    %v2806 = vmul.f32 %v2706, 0.01
    %v2807 = vmul.f32 %v2418, 0.01
    %v2808 = vmul.f32 %v2420, 0.01
    %v2809 = vmul.f32 %v2711, 0.01
    %v2810 = vmul.f32 %v2422, 0.01
    %v2811 = vmul.f32 %v2424, 0.01
    %v2812 = vmul.f32 %v2714, 0.01
    %v2813 = vsel %vm2717, %v2348, %v2765
    %v2814 = vsel %vm2718, %v2350, %v2766
    %v2815 = vsel %vm2719, %v2655, %v2767
    %v2816 = vsel %vm2720, %v2352, %v2768
    %v2817 = vsel %vm2721, %v2354, %v2769
    %v2818 = vsel %vm2722, %v2658, %v2770
    %v2819 = vsel %vm2723, %v2358, %v2771
    %v2820 = vsel %vm2724, %v2360, %v2772
    %v2821 = vsel %vm2725, %v2663, %v2773
    %v2822 = vsel %vm2726, %v2362, %v2774
    %v2823 = vsel %vm2727, %v2364, %v2775
    %v2824 = vsel %vm2728, %v2666, %v2776
    %v2825 = vsel %vm2729, %v2368, %v2777
    %v2826 = vsel %vm2730, %v2370, %v2778
    %v2827 = vsel %vm2731, %v2671, %v2779
    %v2828 = vsel %vm2732, %v2372, %v2780
    %v2829 = vsel %vm2733, %v2374, %v2781
    %v2830 = vsel %vm2734, %v2674, %v2782
    %v2831 = vsel %vm2735, %v2378, %v2783
    %v2832 = vsel %vm2736, %v2380, %v2784
    %v2833 = vsel %vm2737, %v2679, %v2785
    %v2834 = vsel %vm2738, %v2382, %v2786
    %v2835 = vsel %vm2739, %v2384, %v2787
    %v2836 = vsel %vm2740, %v2682, %v2788
    %v2837 = vsel %vm2741, %v2388, %v2789
    %v2838 = vsel %vm2742, %v2390, %v2790
    %v2839 = vsel %vm2743, %v2687, %v2791
    %v2840 = vsel %vm2744, %v2392, %v2792
    %v2841 = vsel %vm2745, %v2394, %v2793
    %v2842 = vsel %vm2746, %v2690, %v2794
    %v2843 = vsel %vm2747, %v2398, %v2795
    %v2844 = vsel %vm2748, %v2400, %v2796
    %v2845 = vsel %vm2749, %v2695, %v2797
    %v2846 = vsel %vm2750, %v2402, %v2798
    %v2847 = vsel %vm2751, %v2404, %v2799
    %v2848 = vsel %vm2752, %v2698, %v2800
    %v2849 = vsel %vm2753, %v2408, %v2801
    %v2850 = vsel %vm2754, %v2410, %v2802
    %v2851 = vsel %vm2755, %v2703, %v2803
    %v2852 = vsel %vm2756, %v2412, %v2804
    %v2853 = vsel %vm2757, %v2414, %v2805
    %v2854 = vsel %vm2758, %v2706, %v2806
    %v2855 = vsel %vm2759, %v2418, %v2807
    %v2856 = vsel %vm2760, %v2420, %v2808
    %v2857 = vsel %vm2761, %v2711, %v2809
    %v2858 = vsel %vm2762, %v2422, %v2810
    %v2859 = vsel %vm2763, %v2424, %v2811
    %v2860 = vsel %vm2764, %v2714, %v2812
    %v2861 = vpack.c.bf16 %v2816, %v2813
    %v2862 = vpack.c.bf16 %v2817, %v2814
    %v2863 = vpack.c.bf16 %v2818, %v2815
    %v2864 = vpack.c.bf16 %v2822, %v2819
    %v2865 = vpack.c.bf16 %v2823, %v2820
    %v2866 = vpack.c.bf16 %v2824, %v2821
    %v2867 = vpack.c.bf16 %v2828, %v2825
    %v2868 = vpack.c.bf16 %v2829, %v2826
    %v2869 = vpack.c.bf16 %v2830, %v2827
    %v2870 = vpack.c.bf16 %v2834, %v2831
    %v2871 = vpack.c.bf16 %v2835, %v2832
    %v2872 = vpack.c.bf16 %v2836, %v2833
    %v2873 = vpack.c.bf16 %v2840, %v2837
    %v2874 = vpack.c.bf16 %v2841, %v2838
    %v2875 = vpack.c.bf16 %v2842, %v2839
    %v2876 = vpack.c.bf16 %v2846, %v2843
    %v2877 = vpack.c.bf16 %v2847, %v2844
    %v2878 = vpack.c.bf16 %v2848, %v2845
    %v2879 = vpack.c.bf16 %v2852, %v2849
    %v2880 = vpack.c.bf16 %v2853, %v2850
    %v2881 = vpack.c.bf16 %v2854, %v2851
    %v2882 = vpack.c.bf16 %v2858, %v2855
    %v2883 = vpack.c.bf16 %v2859, %v2856
    %v2884 = vpack.c.bf16 %v2860, %v2857
    %v2885 = vld [vmem:[#allocation5] sm:$0xf]
    %v2886 = vld [vmem:[#allocation5 + $0x4] sm:$0xf]
    %v2887 = vld [vmem:[#allocation5 + $0x8] sm:$0xf]
    %v2888 = vld [vmem:[#allocation5 + $0xc] sm:$0xf]
    %v2889 = vld [vmem:[#allocation5 + $0x10] sm:$0xf]
    %v2890 = vld [vmem:[#allocation5 + $0x14] sm:$0xf]
    %v2891 = vld [vmem:[#allocation5 + $0x18] sm:$0xf]
    %v2892 = vld [vmem:[#allocation5 + $0x1c] sm:$0xf]
    %v2893 = vld [vmem:[#allocation5 + $0x20] sm:$0xf]
    %v2894 = vld [vmem:[#allocation5 + $0x24] sm:$0xf]
    %v2895 = vld [vmem:[#allocation5 + $0x28] sm:$0xf]
    %v2896 = vld [vmem:[#allocation5 + $0x2c] sm:$0xf]
    %v2897 = vld [vmem:[#allocation5 + $0x30] sm:$0xf]
    %v2898 = vld [vmem:[#allocation5 + $0x34] sm:$0xf]
    %v2899 = vld [vmem:[#allocation5 + $0x38] sm:$0xf]
    %v2900 = vld [vmem:[#allocation5 + $0x3c] sm:$0xf]
    %v2901 = vld [vmem:[#allocation5 + $0x40] sm:$0xf]
    %v2902 = vld [vmem:[#allocation5 + $0x44] sm:$0xf]
    %v2903 = vld [vmem:[#allocation5 + $0x48] sm:$0xf]
    %v2904 = vld [vmem:[#allocation5 + $0x4c] sm:$0xf]
    %v2905 = vld [vmem:[#allocation5 + $0x50] sm:$0xf]
    %v2906 = vld [vmem:[#allocation5 + $0x54] sm:$0xf]
    %v2907 = vld [vmem:[#allocation5 + $0x58] sm:$0xf]
    %v2908 = vld [vmem:[#allocation5 + $0x5c] sm:$0xf]
    %v2909 = vld [vmem:[#allocation5 + $0x60] sm:$0xf]
    %v2910 = vld [vmem:[#allocation5 + $0x64] sm:$0xf]
    %v2911 = vld [vmem:[#allocation5 + $0x68] sm:$0xf]
    %v2912 = vld [vmem:[#allocation5 + $0x6c] sm:$0xf]
    %v2913 = vld [vmem:[#allocation5 + $0x70] sm:$0xf]
    %v2914 = vld [vmem:[#allocation5 + $0x74] sm:$0xf]
    %v2915 = vld [vmem:[#allocation5 + $0x78] sm:$0xf]
    %v2916 = vld [vmem:[#allocation5 + $0x7c] sm:$0xf]
    %v2917 = vld [vmem:[#allocation5 + $0x80] sm:$0xf]
    %v2918 = vld [vmem:[#allocation5 + $0x84] sm:$0xf]
    %v2919 = vld [vmem:[#allocation5 + $0x88] sm:$0xf]
    %v2920 = vld [vmem:[#allocation5 + $0x8c] sm:$0xf]
    %v2921 = vld [vmem:[#allocation5 + $0x90] sm:$0xf]
    %v2922 = vld [vmem:[#allocation5 + $0x94] sm:$0xf]
    %v2923 = vld [vmem:[#allocation5 + $0x98] sm:$0xf]
    %v2924 = vld [vmem:[#allocation5 + $0x9c] sm:$0xf]
    %v2925 = vld [vmem:[#allocation5 + $0xa0] sm:$0xf]
    %v2926 = vld [vmem:[#allocation5 + $0xa4] sm:$0xf]
    %v2927 = vld [vmem:[#allocation5 + $0xa8] sm:$0xf]
    %v2928 = vld [vmem:[#allocation5 + $0xac] sm:$0xf]
    %v2929 = vld [vmem:[#allocation5 + $0xb0] sm:$0xf]
    %v2930 = vld [vmem:[#allocation5 + $0xb4] sm:$0xf]
    %v2931 = vld [vmem:[#allocation5 + $0xb8] sm:$0xf]
    %v2932 = vld [vmem:[#allocation5 + $0xbc] sm:$0xf]
    %v2933 = vld [vmem:[%s6] sm:$0x1]
    %v2935 = vlaneseq
    %v2936 = vshrl.u32 %v2935, 7
    %v2937 = vsub.s32 0, %v2936
    %v2938 = vrot.slane %v2933, %v2937
    %v2988 = vunpack.c.l.b16 %v2885
    %v2989 = vunpack.c.l.b16 %v2886
    %v2990 = vunpack.c.l.b16 %v2887
    %v2991 = vunpack.c.l.b16 %v2888
    %v2992 = vunpack.c.l.b16 %v2889
    %v2993 = vunpack.c.l.b16 %v2890
    %v2994 = vunpack.c.l.b16 %v2891
    %v2995 = vunpack.c.l.b16 %v2892
    %v2996 = vunpack.c.l.b16 %v2893
    %v2997 = vunpack.c.l.b16 %v2894
    %v2998 = vunpack.c.l.b16 %v2895
    %v2999 = vunpack.c.l.b16 %v2896
    %v3000 = vunpack.c.l.b16 %v2897
    %v3001 = vunpack.c.l.b16 %v2898
    %v3002 = vunpack.c.l.b16 %v2899
    %v3003 = vunpack.c.l.b16 %v2900
    %v3004 = vunpack.c.l.b16 %v2901
    %v3005 = vunpack.c.l.b16 %v2902
    %v3006 = vunpack.c.l.b16 %v2903
    %v3007 = vunpack.c.l.b16 %v2904
    %v3008 = vunpack.c.l.b16 %v2905
    %v3009 = vunpack.c.l.b16 %v2906
    %v3010 = vunpack.c.l.b16 %v2907
    %v3011 = vunpack.c.l.b16 %v2908
    %v3012 = vunpack.c.l.b16 %v2909
    %v3013 = vunpack.c.l.b16 %v2910
    %v3014 = vunpack.c.l.b16 %v2911
    %v3015 = vunpack.c.l.b16 %v2912
    %v3016 = vunpack.c.l.b16 %v2913
    %v3017 = vunpack.c.l.b16 %v2914
    %v3018 = vunpack.c.l.b16 %v2915
    %v3019 = vunpack.c.l.b16 %v2916
    %v3020 = vunpack.c.l.b16 %v2917
    %v3021 = vunpack.c.l.b16 %v2918
    %v3022 = vunpack.c.l.b16 %v2919
    %v3023 = vunpack.c.l.b16 %v2920
    %v3024 = vunpack.c.l.b16 %v2921
    %v3025 = vunpack.c.l.b16 %v2922
    %v3026 = vunpack.c.l.b16 %v2923
    %v3027 = vunpack.c.l.b16 %v2924
    %v3028 = vunpack.c.l.b16 %v2925
    %v3029 = vunpack.c.l.b16 %v2926
    %v3030 = vunpack.c.l.b16 %v2927
    %v3031 = vunpack.c.l.b16 %v2928
    %v3032 = vunpack.c.l.b16 %v2929
    %v3033 = vunpack.c.l.b16 %v2930
    %v3034 = vunpack.c.l.b16 %v2931
    %v3035 = vunpack.c.l.b16 %v2932
    %v3036 = vpack.c.b16 %v2989, %v2988
    %v3037 = vpack.c.b16 %v2991, %v2990
    %v3038 = vpack.c.b16 %v2993, %v2992
    %v3039 = vpack.c.b16 %v2995, %v2994
    %v3040 = vpack.c.b16 %v2997, %v2996
    %v3041 = vpack.c.b16 %v2999, %v2998
    %v3042 = vpack.c.b16 %v3001, %v3000
    %v3043 = vpack.c.b16 %v3003, %v3002
    %v3044 = vpack.c.b16 %v3005, %v3004
    %v3045 = vpack.c.b16 %v3007, %v3006
    %v3046 = vpack.c.b16 %v3009, %v3008
    %v3047 = vpack.c.b16 %v3011, %v3010
    %v3048 = vpack.c.b16 %v3013, %v3012
    %v3049 = vpack.c.b16 %v3015, %v3014
    %v3050 = vpack.c.b16 %v3017, %v3016
    %v3051 = vpack.c.b16 %v3019, %v3018
    %v3052 = vpack.c.b16 %v3021, %v3020
    %v3053 = vpack.c.b16 %v3023, %v3022
    %v3054 = vpack.c.b16 %v3025, %v3024
    %v3055 = vpack.c.b16 %v3027, %v3026
    %v3056 = vpack.c.b16 %v3029, %v3028
    %v3057 = vpack.c.b16 %v3031, %v3030
    %v3058 = vpack.c.b16 %v3033, %v3032
    %v3059 = vpack.c.b16 %v3035, %v3034
    %3084 = vmatprep.subr.bf16.mxu0 0
    %3085 = vmatpush1.bf16.msra.mxu0 %v3036
    %3086 = vmatprep.subr.bf16.mxu0 0
    %3087 = vmatpush1.bf16.msra.mxu0 %v3037
    %3088 = vmatprep.subr.bf16.mxu0 0
    %3089 = vmatpush1.bf16.msra.mxu0 %v3038
    %3090 = vmatprep.subr.bf16.mxu0 0
    %3091 = vmatpush1.bf16.msra.mxu0 %v3039
    %3092 = vmatprep.subr.bf16.mxu0 0
    %3093 = vmatpush1.bf16.msra.mxu0 %v3040
    %3094 = vmatprep.subr.bf16.mxu0 0
    %3095 = vmatpush1.bf16.msra.mxu0 %v3041
    %3096 = vmatprep.subr.bf16.mxu0 0
    %3097 = vmatpush1.bf16.msra.mxu0 %v3042
    %3098 = vmatprep.subr.bf16.mxu0 0
    %3099 = vmatpush1.bf16.msra.mxu0 %v3043
    %3100 = vmatprep.subr.bf16.mxu0 0
    %3101 = vmatpush1.bf16.msra.mxu0 %v3044
    %3102 = vmatprep.subr.bf16.mxu0 0
    %3103 = vmatpush1.bf16.msra.mxu0 %v3045
    %3104 = vmatprep.subr.bf16.mxu0 0
    %3105 = vmatpush1.bf16.msra.mxu0 %v3046
    %3106 = vmatprep.subr.bf16.mxu0 0
    %3107 = vmatpush1.bf16.msra.mxu0 %v3047
    %3108 = vmatprep.subr.bf16.mxu0 0
    %3109 = vmatpush1.bf16.msra.mxu0 %v3048
    %3110 = vmatprep.subr.bf16.mxu0 0
    %3111 = vmatpush1.bf16.msra.mxu0 %v3049
    %3112 = vmatprep.subr.bf16.mxu0 0
    %3113 = vmatpush1.bf16.msra.mxu0 %v3050
    %3114 = vmatprep.subr.bf16.mxu0 0
    %3115 = vmatpush1.bf16.msra.mxu0 %v3051
    %3116 = vmatprep.mubr.bf16.mxu0 %v2862
    %3117 = vmatmul.mubr.bf16.gmra.mrb[0].mxu0 %v2861
    %v3118 = vpop.f32.mrb[0].mxu0
    %v3119 = vadd.f32 %v2938, %v3118
    %v3120 = vpop.f32.mrb[0].mxu0
    %v3121 = vpop.f32.mrb[0].mxu0
    %v3122 = vadd.f32 %v2938, %v3121
    %v3123 = vpop.f32.mrb[0].mxu0
    %3124 = vmatprep.mubr.bf16.mxu0 %v2865
    %3125 = vmatmul.mubr.bf16.gmra.mrb[0].mxu0 %v2864
    %v3126 = vpop.f32.mrb[0].mxu0
    %v3127 = vadd.f32 %v2938, %v3126
    %v3128 = vpop.f32.mrb[0].mxu0
    %v3129 = vpop.f32.mrb[0].mxu0
    %v3130 = vadd.f32 %v2938, %v3129
    %v3131 = vpop.f32.mrb[0].mxu0
    %3132 = vmatprep.mubr.bf16.mxu0 %v2868
    %3133 = vmatmul.mubr.bf16.gmra.mrb[0].mxu0 %v2867
    %v3134 = vpop.f32.mrb[0].mxu0
    %v3135 = vadd.f32 %v2938, %v3134
    %v3136 = vpop.f32.mrb[0].mxu0
    %v3137 = vpop.f32.mrb[0].mxu0
    %v3138 = vadd.f32 %v2938, %v3137
    %v3139 = vpop.f32.mrb[0].mxu0
    %3140 = vmatprep.mubr.bf16.mxu0 %v2871
    %3141 = vmatmul.mubr.bf16.gmra.mrb[0].mxu0 %v2870
    %v3142 = vpop.f32.mrb[0].mxu0
    %v3143 = vadd.f32 %v2938, %v3142
    %v3144 = vpop.f32.mrb[0].mxu0
    %v3145 = vpop.f32.mrb[0].mxu0
    %v3146 = vadd.f32 %v2938, %v3145
    %v3147 = vpop.f32.mrb[0].mxu0
    %3148 = vmatprep.mubr.bf16.mxu0 %v2874
    %3149 = vmatmul.mubr.bf16.gmra.mrb[0].mxu0 %v2873
    %v3150 = vpop.f32.mrb[0].mxu0
    %v3151 = vadd.f32 %v2938, %v3150
    %v3152 = vpop.f32.mrb[0].mxu0
    %v3153 = vpop.f32.mrb[0].mxu0
    %v3154 = vadd.f32 %v2938, %v3153
    %v3155 = vpop.f32.mrb[0].mxu0
    %3156 = vmatprep.mubr.bf16.mxu0 %v2877
    %3157 = vmatmul.mubr.bf16.gmra.mrb[0].mxu0 %v2876
    %v3158 = vpop.f32.mrb[0].mxu0
    %v3159 = vadd.f32 %v2938, %v3158
    %v3160 = vpop.f32.mrb[0].mxu0
    %v3161 = vpop.f32.mrb[0].mxu0
    %v3162 = vadd.f32 %v2938, %v3161
    %v3163 = vpop.f32.mrb[0].mxu0
    %3164 = vmatprep.mubr.bf16.mxu0 %v2880
    %3165 = vmatmul.mubr.bf16.gmra.mrb[0].mxu0 %v2879
    %v3166 = vpop.f32.mrb[0].mxu0
    %v3167 = vadd.f32 %v2938, %v3166
    %v3168 = vpop.f32.mrb[0].mxu0
    %v3169 = vpop.f32.mrb[0].mxu0
    %v3170 = vadd.f32 %v2938, %v3169
    %v3171 = vpop.f32.mrb[0].mxu0
    %3172 = vmatprep.mubr.bf16.mxu0 %v2883
    %3173 = vmatmul.mubr.bf16.gmra.mrb[0].mxu0 %v2882
    %v3174 = vpop.f32.mrb[0].mxu0
    %v3175 = vadd.f32 %v2938, %v3174
    %v3176 = vpop.f32.mrb[0].mxu0
    %v3177 = vpop.f32.mrb[0].mxu0
    %v3178 = vadd.f32 %v2938, %v3177
    %v3179 = vpop.f32.mrb[0].mxu0
    %3180 = vdwg.mxu0
    %3181 = vmatprep.subr.bf16.mxu0 0
    %3182 = vmatpush1.bf16.msra.mxu0 %v3052
    %3183 = vmatprep.subr.bf16.mxu0 0
    %3184 = vmatpush1.bf16.msra.mxu0 %v3053
    %3185 = vmatprep.subr.bf16.mxu0 0
    %3186 = vmatpush1.bf16.msra.mxu0 %v3054
    %3187 = vmatprep.subr.bf16.mxu0 0
    %3188 = vmatpush1.bf16.msra.mxu0 %v3055
    %3189 = vmatprep.subr.bf16.mxu0 0
    %3190 = vmatpush1.bf16.msra.mxu0 %v3056
    %3191 = vmatprep.subr.bf16.mxu0 0
    %3192 = vmatpush1.bf16.msra.mxu0 %v3057
    %3193 = vmatprep.subr.bf16.mxu0 0
    %3194 = vmatpush1.bf16.msra.mxu0 %v3058
    %3195 = vmatprep.subr.bf16.mxu0 0
    %3196 = vmatpush1.bf16.msra.mxu0 %v3059
    %3197 = vmatprep.subr.bf16.mxu0 0
    %3198 = vmatpush1.bf16.msra.mxu0 0
    %3199 = vmatprep.subr.bf16.mxu0 0
    %3200 = vmatpush1.bf16.msra.mxu0 0
    %3201 = vmatprep.subr.bf16.mxu0 0
    %3202 = vmatpush1.bf16.msra.mxu0 0
    %3203 = vmatprep.subr.bf16.mxu0 0
    %3204 = vmatpush1.bf16.msra.mxu0 0
    %3205 = vmatprep.subr.bf16.mxu0 0
    %3206 = vmatpush1.bf16.msra.mxu0 0
    %3207 = vmatprep.subr.bf16.mxu0 0
    %3208 = vmatpush1.bf16.msra.mxu0 0
    %3209 = vmatprep.subr.bf16.mxu0 0
    %3210 = vmatpush1.bf16.msra.mxu0 0
    %3211 = vmatprep.subr.bf16.mxu0 0
    %3212 = vmatpush1.bf16.msra.mxu0 0
    %3213 = vmatprep.mubr.bf16.mxu0 0
    %3214 = vmatmul.mubr.bf16.gmra.mrb[0].mxu0 %v2863
    %v3215 = vpop.f32.mrb[0].mxu0
    %v3216 = vadd.f32 %v3119, %v3215
    %v3217 = vpop.f32.mrb[0].mxu0
    %v3218 = vpop.f32.mrb[0].mxu0
    %v3219 = vadd.f32 %v3122, %v3218
    %v3220 = vpop.f32.mrb[0].mxu0
    %3221 = vmatprep.mubr.bf16.mxu0 0
    %3222 = vmatmul.mubr.bf16.gmra.mrb[0].mxu0 %v2866
    %v3223 = vpop.f32.mrb[0].mxu0
    %v3224 = vadd.f32 %v3127, %v3223
    %v3225 = vpop.f32.mrb[0].mxu0
    %v3226 = vpop.f32.mrb[0].mxu0
    %v3227 = vadd.f32 %v3130, %v3226
    %v3228 = vpop.f32.mrb[0].mxu0
    %3229 = vmatprep.mubr.bf16.mxu0 0
    %3230 = vmatmul.mubr.bf16.gmra.mrb[0].mxu0 %v2869
    %v3231 = vpop.f32.mrb[0].mxu0
    %v3232 = vadd.f32 %v3135, %v3231
    %v3233 = vpop.f32.mrb[0].mxu0
    %v3234 = vpop.f32.mrb[0].mxu0
    %v3235 = vadd.f32 %v3138, %v3234
    %v3236 = vpop.f32.mrb[0].mxu0
    %3237 = vmatprep.mubr.bf16.mxu0 0
    %3238 = vmatmul.mubr.bf16.gmra.mrb[0].mxu0 %v2872
    %v3239 = vpop.f32.mrb[0].mxu0
    %v3240 = vadd.f32 %v3143, %v3239
    %v3241 = vpop.f32.mrb[0].mxu0
    %v3242 = vpop.f32.mrb[0].mxu0
    %v3243 = vadd.f32 %v3146, %v3242
    %v3244 = vpop.f32.mrb[0].mxu0
    %3245 = vmatprep.mubr.bf16.mxu0 0
    %3246 = vmatmul.mubr.bf16.gmra.mrb[0].mxu0 %v2875
    %v3247 = vpop.f32.mrb[0].mxu0
    %v3248 = vadd.f32 %v3151, %v3247
    %v3249 = vpop.f32.mrb[0].mxu0
    %v3250 = vpop.f32.mrb[0].mxu0
    %v3251 = vadd.f32 %v3154, %v3250
    %v3252 = vpop.f32.mrb[0].mxu0
    %3253 = vmatprep.mubr.bf16.mxu0 0
    %3254 = vmatmul.mubr.bf16.gmra.mrb[0].mxu0 %v2878
    %v3255 = vpop.f32.mrb[0].mxu0
    %v3256 = vadd.f32 %v3159, %v3255
    %v3257 = vpop.f32.mrb[0].mxu0
    %v3258 = vpop.f32.mrb[0].mxu0
    %v3259 = vadd.f32 %v3162, %v3258
    %v3260 = vpop.f32.mrb[0].mxu0
    %3261 = vmatprep.mubr.bf16.mxu0 0
    %3262 = vmatmul.mubr.bf16.gmra.mrb[0].mxu0 %v2881
    %v3263 = vpop.f32.mrb[0].mxu0
    %v3264 = vadd.f32 %v3167, %v3263
    %v3265 = vpop.f32.mrb[0].mxu0
    %v3266 = vpop.f32.mrb[0].mxu0
    %v3267 = vadd.f32 %v3170, %v3266
    %v3268 = vpop.f32.mrb[0].mxu0
    %3269 = vmatprep.mubr.bf16.mxu0 0
    %3270 = vmatmul.mubr.bf16.gmra.mrb[0].mxu0 %v2884
    %v3271 = vpop.f32.mrb[0].mxu0
    %v3272 = vadd.f32 %v3175, %v3271
    %v3273 = vpop.f32.mrb[0].mxu0
    %v3274 = vpop.f32.mrb[0].mxu0
    %v3275 = vadd.f32 %v3178, %v3274
    %v3276 = vpop.f32.mrb[0].mxu0
    %3277 = vdwg.mxu0
    %v3278 = vtanh.pop %v3216
    %v3279 = vtanh.pop %v3219
    %v3280 = vtanh.pop %v3224
    %v3281 = vtanh.pop %v3227
    %v3282 = vtanh.pop %v3232
    %v3283 = vtanh.pop %v3235
    %v3284 = vtanh.pop %v3240
    %v3285 = vtanh.pop %v3243
    %v3286 = vtanh.pop %v3248
    %v3287 = vtanh.pop %v3251
    %v3288 = vtanh.pop %v3256
    %v3289 = vtanh.pop %v3259
    %v3290 = vtanh.pop %v3264
    %v3291 = vtanh.pop %v3267
    %v3292 = vtanh.pop %v3272
    %v3293 = vtanh.pop %v3275
    %3294 = vst [vmem:[#allocation7] sm:$0xff] %v3278
    %3295 = vst [vmem:[#allocation7 + $0x8] sm:$0xff] %v3279
    %3296 = vst [vmem:[#allocation7 + $0x10] sm:$0xff] %v3280
    %3297 = vst [vmem:[#allocation7 + $0x18] sm:$0xff] %v3281
    %3298 = vst [vmem:[#allocation7 + $0x20] sm:$0xff] %v3282
    %3299 = vst [vmem:[#allocation7 + $0x28] sm:$0xff] %v3283
    %3300 = vst [vmem:[#allocation7 + $0x30] sm:$0xff] %v3284
    %3301 = vst [vmem:[#allocation7 + $0x38] sm:$0xff] %v3285
    %3302 = vst [vmem:[#allocation7 + $0x40] sm:$0xff] %v3286
    %3303 = vst [vmem:[#allocation7 + $0x48] sm:$0xff] %v3287
    %3304 = vst [vmem:[#allocation7 + $0x50] sm:$0xff] %v3288
    %3305 = vst [vmem:[#allocation7 + $0x58] sm:$0xff] %v3289
    %3306 = vst [vmem:[#allocation7 + $0x60] sm:$0xff] %v3290
    %3307 = vst [vmem:[#allocation7 + $0x68] sm:$0xff] %v3291
    %3308 = vst [vmem:[#allocation7 + $0x70] sm:$0xff] %v3292
    %3309 = vst [vmem:[#allocation7 + $0x78] sm:$0xff] %v3293
    // Predicated region
    $region38: #{tpu_custom_call.1} parent=1 // pred_check
      _
    $region39: #{tpu_custom_call.1} parent=1 // pred_check_branch
      %3311 = sbr.rel (0) target = $region41
    $region40: #{tpu_custom_call.1} parent=1 // pred_region
      %s3313 = ssub.s32 2048, 2048
      %3314 = vsyncadd [#allocation4], %s3313
      %s3315 = sshll.u32 [#allocation7], 4
      %s3316 = int_to_ptr.vmem [resolvable:$true] %s3315
      %3321 = dma.vmem_to_hbm [thread:$0]  %s3316, 2048, %s7, [#allocation4], 128, 128, 8
    $region41: #{tpu_custom_call.1} parent=1 // pred_fallthru
      _
    // Predicated region
    $region42: #{tpu_custom_call.1} parent=1 // pred_check
      _
    $region43: #{tpu_custom_call.1} parent=1 // pred_check_branch
      %3323 = sbr.rel (0) target = $region45
    $region44: #{tpu_custom_call.1} parent=1 // pred_region
      %3324 = dma.done [#allocation4], 2048
    $region45: #{tpu_custom_call.1} parent=1 // pred_fallthru
      _
    %3325 = vsyncpa [#allocation3], 1
    %3326 = vsyncpa [#allocation6], 1
    %3327 = vsyncpa [#allocation4], 1

</llo_original>
